<compile_context>
chip_gen: v7x
topology: tpu7x:2x2x1
jax: 0.10.0
libtpu: 0.0.40
codegen_flags: <defaults>
</compile_context>

<pallas_src>
import functools

import jax
import jax.numpy as jnp
from jax import lax
from jax.experimental import pallas as pl
from jax.experimental.pallas import tpu as pltpu


def multi_gat_kernel(x_ref, w_all_ref, a1_blk_ref, a2_blk_ref, mask_ref,
                     w_out_ref, a_out_ref, out_ref, *,
                     nheads, nhid, alpha, mxu_dtype):
    """Fused Multi_GAT forward: H attention heads + out_att + ELUs, one call."""
    mask = mask_ref[...]                       # (N, N) additive: 0 or -9e15
    alpha_f = jnp.float32(alpha)
    N = x_ref.shape[0]
    nclass = w_out_ref.shape[1]

    def masked_softmax_attend(f1, f2_row, wh_mxu):
        # f1: (N,1) f32, f2_row: (1,N) f32, wh_mxu: (N,F) already in MXU dtype.
        e = f1 + f2_row                                    # (N, N)
        e = jnp.maximum(e, alpha_f * e)                    # LeakyReLU(alpha)
        e = e + mask                                       # adjacency mask (additive)
        e = e - jnp.max(e, axis=1, keepdims=True)
        p = jnp.exp(e)
        den = jnp.sum(p, axis=1, keepdims=True)
        inv = pl.reciprocal(den, approx=True)              # EUP slot
        inv = inv * (2.0 - den * inv)                      # one Newton step -> ~exact
        attn = p * inv
        h_prime = jnp.dot(attn.astype(mxu_dtype), wh_mxu,
                          preferred_element_type=jnp.float32)
        # ELU: exp(x)-1 negative branch (matches reference module math).
        return jnp.where(h_prime > 0.0, h_prime, jnp.exp(h_prime) - 1.0)

    # ---- layer 1: all heads share one wide bf16 MXU matmul ------------------
    Wh_all = jnp.dot(x_ref[...].astype(mxu_dtype),
                     w_all_ref[...].astype(mxu_dtype),
                     preferred_element_type=jnp.float32)    # (N, H*nhid) f32
    # Batched score projections via block-diagonal matrices (2 MXU pushes,
    # no narrow per-head lane slices of the `a` vectors).
    f1_all = jnp.dot(Wh_all, a1_blk_ref[...],
                     preferred_element_type=jnp.float32)    # (N, H)
    f2_all = lax.dot_general(a2_blk_ref[...], Wh_all,
                             (((1,), (1,)), ((), ())),
                             preferred_element_type=jnp.float32)  # (H, N)
    Wh_all_mxu = Wh_all.astype(mxu_dtype)
    w_out = w_out_ref[...]

    # ---- per-head attention + fused layer-2 projection (accumulate) ---------
    # Wh_out = sum_h ELU(head_h) @ W_out[h*nhid:(h+1)*nhid, :]  (no concat).
    wh_out = jnp.zeros((N, nclass), jnp.float32)
    for h in range(nheads):                                 # static unroll
        lo = h * nhid
        head_out = masked_softmax_attend(f1_all[:, h:h + 1],
                                         f2_all[h:h + 1, :],
                                         Wh_all_mxu[:, lo:lo + nhid])
        wh_out = wh_out + jnp.dot(head_out.astype(mxu_dtype),
                                  w_out[lo:lo + nhid, :].astype(mxu_dtype),
                                  preferred_element_type=jnp.float32)

    # ---- layer 2: out_att (concat=False) + final ELU -------------------------
    a_out = a_out_ref[...]                                  # (2, nclass)
    f1_o = lax.dot_general(wh_out, a_out[0:1, :], (((1,), (1,)), ((), ())),
                           preferred_element_type=jnp.float32)   # (N, 1)
    f2_o = lax.dot_general(a_out[1:2, :], wh_out, (((1,), (1,)), ((), ())),
                           preferred_element_type=jnp.float32)   # (1, N)
    out_ref[...] = masked_softmax_attend(f1_o, f2_o, wh_out.astype(mxu_dtype))


def multi_gat_forward(x, adj, params, *, alpha, nheads, nhid,
                      mxu_dtype=jnp.bfloat16):
    """Multi_GAT.forward(x, adj) -- eval mode, single fused Pallas call."""
    N = x.shape[0]
    nclass = params["W_out"].shape[1]
    a_all = params["a_all"]                                  # (2, H*nhid)

    # Block-diagonal packing of the per-head attention vectors (host-side).
    sel = jnp.repeat(jnp.eye(nheads, dtype=jnp.float32), nhid, axis=0)   # (H*nhid, H)
    a1_blk = a_all[0][:, None] * sel                          # (H*nhid, H)
    a2_blk = (a_all[1][:, None] * sel).T                      # (H, H*nhid)

    # Additive adjacency mask, shared by all H+1 attention heads.
    # (Could be stored bf16 for large N to halve the only O(N^2) HBM input.)
    mask = jnp.where(adj > 0, 0.0, -9e15).astype(jnp.float32)

    kernel = functools.partial(multi_gat_kernel, nheads=nheads, nhid=nhid,
                               alpha=alpha, mxu_dtype=mxu_dtype)
    vmem = pltpu.MemorySpace.VMEM
    return pl.pallas_call(
        kernel,
        out_shape=jax.ShapeDtypeStruct((N, nclass), jnp.float32),
        in_specs=[pl.BlockSpec(memory_space=vmem)] * 7,
        out_specs=pl.BlockSpec(memory_space=vmem),
        compiler_params=pltpu.CompilerParams(
            # Safe on every chip at these shapes; raise / switch to the
            # row-tiled grid (see TODO above) for non-toy N.
            vmem_limit_bytes=32 * 1024 * 1024),
    )(x, params["W_all"], a1_blk, a2_blk, mask,
      params["W_out"], params["a_out"])


def init_params(key, nfeat, nhid, nclass, nheads):
    """Xavier-uniform-style init (gain=1.414, as in pyGAT), packed for the kernel."""
    gain = 1.414
    ks = jax.random.split(key, 4)

    def xavier(k, shape):
        fan_in, fan_out = shape[-2], shape[-1]
        bound = gain * jnp.sqrt(6.0 / (fan_in + fan_out))
        return jax.random.uniform(k, shape, jnp.float32, -bound, bound)

    W_heads = xavier(ks[0], (nheads, nfeat, nhid))        # per-head W
    a_heads = xavier(ks[1], (nheads, 2 * nhid, 1))        # per-head a = [a1; a2]
    W_out = xavier(ks[2], (nhid * nheads, nclass))
    a_out = xavier(ks[3], (2 * nclass, 1))

    # Pack heads on the lane (output-feature) axis.
    W_all = jnp.transpose(W_heads, (1, 0, 2)).reshape(nfeat, nheads * nhid)
    a1 = a_heads[:, :nhid, 0].reshape(-1)                 # (H*nhid,)
    a2 = a_heads[:, nhid:, 0].reshape(-1)
    a_all = jnp.stack([a1, a2], axis=0)                   # (2, H*nhid)
    a_out_packed = jnp.stack([a_out[:nclass, 0], a_out[nclass:, 0]], axis=0)  # (2, nclass)

    return dict(W_all=W_all, a_all=a_all, W_out=W_out, a_out=a_out_packed)


def reference_forward(x, adj, params, *, alpha, nheads, nhid,
                      mxu_dtype=jnp.bfloat16):
    """Pure-JAX reference of the same mixed-precision math (exact softmax)."""
    W_all, a_all = params["W_all"], params["a_all"]
    W_out, a_out = params["W_out"], params["a_out"]
    neg_big = jnp.float32(-9e15)

    def mm(a, b):
        return jnp.dot(a.astype(mxu_dtype), b.astype(mxu_dtype),
                       preferred_element_type=jnp.float32)

    def attend(Wh, a1, a2):
        f1 = Wh @ a1[:, None]
        f2 = Wh @ a2[:, None]
        e = f1 + f2.T
        e = jnp.maximum(e, alpha * e)
        e = jnp.where(adj > 0, e, neg_big)
        att = jax.nn.softmax(e, axis=1)
        h = mm(att, Wh)
        return jnp.where(h > 0, h, jnp.exp(h) - 1.0)

    Wh_all = mm(x, W_all)
    outs = [attend(Wh_all[:, h * nhid:(h + 1) * nhid],
                   a_all[0, h * nhid:(h + 1) * nhid],
                   a_all[1, h * nhid:(h + 1) * nhid]) for h in range(nheads)]
    x_cat = jnp.concatenate(outs, axis=1)
    Wh_out = mm(x_cat, W_out)
    return attend(Wh_out, a_out[0], a_out[1])


if __name__ == "__main__":
    N, nfeat, nhid, nclass, nheads = 32, 16, 8, 4, 4
    alpha = 0.2
    dropout = 0.6  # unused at inference (eval mode)

    key = jax.random.PRNGKey(0)
    k_x, k_adj, k_p = jax.random.split(key, 3)

    x = jax.random.normal(k_x, (N, nfeat), dtype=jnp.float32)
    adj = (jax.random.uniform(k_adj, (N, N)) > 0.7).astype(jnp.float32)
    adj = jnp.maximum(adj, jnp.eye(N, dtype=jnp.float32))  # self-loops

    params = init_params(k_p, nfeat, nhid, nclass, nheads)

    out = multi_gat_forward(x, adj, params, alpha=alpha, nheads=nheads, nhid=nhid)
    jax.block_until_ready(out)
    assert out.shape == (N, nclass) and out.dtype == jnp.float32
    assert bool(jnp.all(jnp.isfinite(out)))

    ref = reference_forward(x, adj, params, alpha=alpha, nheads=nheads, nhid=nhid)
    max_err = float(jnp.max(jnp.abs(out - ref)))
    assert max_err < 5e-2, max_err

    print("KERNEL_OK")
</pallas_src>

<mosaic_0001>
module attributes {stable_mosaic.version = 11 : i64} {
  func.func @multi_gat_kernel(%arg0: memref<32x16xf32, #tpu.memory_space<vmem>>, %arg1: memref<16x32xf32, #tpu.memory_space<vmem>>, %arg2: memref<32x4xf32, #tpu.memory_space<vmem>>, %arg3: memref<4x32xf32, #tpu.memory_space<vmem>>, %arg4: memref<32x32xf32, #tpu.memory_space<vmem>>, %arg5: memref<32x4xf32, #tpu.memory_space<vmem>>, %arg6: memref<2x4xf32, #tpu.memory_space<vmem>>, %arg7: memref<32x4xf32, #tpu.memory_space<vmem>>) attributes {dimension_semantics = [], scalar_prefetch = 0 : i64, scratch_operands = 0 : i64, tpu.core_type = #tpu.core_type<tc>} {
    %c0 = arith.constant 0 : index
    %c0_0 = arith.constant 0 : index
    %0 = vector.load %arg4[%c0, %c0_0] : memref<32x32xf32, #tpu.memory_space<vmem>>, vector<32x32xf32>
    %c0_1 = arith.constant 0 : index
    %c0_2 = arith.constant 0 : index
    %1 = vector.load %arg0[%c0_1, %c0_2] : memref<32x16xf32, #tpu.memory_space<vmem>>, vector<32x16xf32>
    %2 = arith.truncf %1 : vector<32x16xf32> to vector<32x16xbf16>
    %c0_3 = arith.constant 0 : index
    %c0_4 = arith.constant 0 : index
    %3 = vector.load %arg1[%c0_3, %c0_4] : memref<16x32xf32, #tpu.memory_space<vmem>>, vector<16x32xf32>
    %4 = arith.truncf %3 : vector<16x32xf32> to vector<16x32xbf16>
    %cst = arith.constant dense<0.000000e+00> : vector<32x32xf32>
    %5 = tpu.matmul %2, %4, %cst {dimension_numbers = #tpu.dot_dimension_numbers<[1], [0], [0], [1], [0, 0, 1, 1], [], []>} : vector<32x16xbf16>, vector<16x32xbf16>, vector<32x32xf32> -> vector<32x32xf32>
    %c0_5 = arith.constant 0 : index
    %c0_6 = arith.constant 0 : index
    %6 = vector.load %arg2[%c0_5, %c0_6] : memref<32x4xf32, #tpu.memory_space<vmem>>, vector<32x4xf32>
    %cst_7 = arith.constant dense<0.000000e+00> : vector<32x4xf32>
    %7 = tpu.matmul %5, %6, %cst_7 {dimension_numbers = #tpu.dot_dimension_numbers<[1], [0], [0], [1], [0, 0, 1, 1], [], []>} : vector<32x32xf32>, vector<32x4xf32>, vector<32x4xf32> -> vector<32x4xf32>
    %c0_8 = arith.constant 0 : index
    %c0_9 = arith.constant 0 : index
    %8 = vector.load %arg3[%c0_8, %c0_9] : memref<4x32xf32, #tpu.memory_space<vmem>>, vector<4x32xf32>
    %cst_10 = arith.constant dense<0.000000e+00> : vector<4x32xf32>
    %9 = tpu.matmul %8, %5, %cst_10 {dimension_numbers = #tpu.dot_dimension_numbers<[1], [1], [0], [0], [0, 0, 1, 0], [], []>} : vector<4x32xf32>, vector<32x32xf32>, vector<4x32xf32> -> vector<4x32xf32>
    %10 = arith.truncf %5 : vector<32x32xf32> to vector<32x32xbf16>
    %c0_11 = arith.constant 0 : index
    %c0_12 = arith.constant 0 : index
    %11 = vector.load %arg5[%c0_11, %c0_12] : memref<32x4xf32, #tpu.memory_space<vmem>>, vector<32x4xf32>
    %cst_13 = arith.constant 0.000000e+00 : f32
    %12 = vector.broadcast %cst_13 : f32 to vector<32x4xf32>
    %13 = vector.extract_strided_slice %7 {offsets = [0, 0], sizes = [32, 1], strides = [1, 1]} : vector<32x4xf32> to vector<32x1xf32>
    %14 = vector.extract_strided_slice %9 {offsets = [0, 0], sizes = [1, 32], strides = [1, 1]} : vector<4x32xf32> to vector<1x32xf32>
    %15 = vector.extract_strided_slice %10 {offsets = [0, 0], sizes = [32, 8], strides = [1, 1]} : vector<32x32xbf16> to vector<32x8xbf16>
    %16 = vector.broadcast %13 : vector<32x1xf32> to vector<32x32xf32>
    %17 = vector.broadcast %14 : vector<1x32xf32> to vector<32x32xf32>
    %18 = arith.addf %16, %17 : vector<32x32xf32>
    %cst_14 = arith.constant 2.000000e-01 : f32
    %19 = vector.broadcast %cst_14 : f32 to vector<32x32xf32>
    %20 = arith.mulf %19, %18 : vector<32x32xf32>
    %21 = arith.maximumf %18, %20 : vector<32x32xf32>
    %22 = arith.addf %21, %0 : vector<32x32xf32>
    %cst_15 = arith.constant dense<0xFF800000> : vector<32xf32>
    %23 = vector.multi_reduction <maximumf>, %22, %cst_15 [1] : vector<32x32xf32> to vector<32xf32>
    %24 = vector.shape_cast %23 : vector<32xf32> to vector<32x1xf32>
    %25 = vector.broadcast %24 : vector<32x1xf32> to vector<32x32xf32>
    %26 = arith.subf %22, %25 : vector<32x32xf32>
    %27 = math.exp %26 : vector<32x32xf32>
    %cst_16 = arith.constant dense<0.000000e+00> : vector<32xf32>
    %28 = vector.multi_reduction <add>, %27, %cst_16 [1] : vector<32x32xf32> to vector<32xf32>
    %29 = vector.shape_cast %28 : vector<32xf32> to vector<32x1xf32>
    %30 = tpu.reciprocal %29 {approx = true} : vector<32x1xf32> -> vector<32x1xf32>
    %31 = arith.mulf %29, %30 : vector<32x1xf32>
    %cst_17 = arith.constant 2.000000e+00 : f32
    %32 = vector.broadcast %cst_17 : f32 to vector<32x1xf32>
    %33 = arith.subf %32, %31 : vector<32x1xf32>
    %34 = arith.mulf %30, %33 : vector<32x1xf32>
    %35 = vector.broadcast %34 : vector<32x1xf32> to vector<32x32xf32>
    %36 = arith.mulf %27, %35 : vector<32x32xf32>
    %37 = arith.truncf %36 : vector<32x32xf32> to vector<32x32xbf16>
    %cst_18 = arith.constant dense<0.000000e+00> : vector<32x8xf32>
    %38 = tpu.matmul %37, %15, %cst_18 {dimension_numbers = #tpu.dot_dimension_numbers<[1], [0], [0], [1], [0, 0, 1, 1], [], []>} : vector<32x32xbf16>, vector<32x8xbf16>, vector<32x8xf32> -> vector<32x8xf32>
    %cst_19 = arith.constant 0.000000e+00 : f32
    %39 = vector.broadcast %cst_19 : f32 to vector<32x8xf32>
    %40 = arith.cmpf ogt, %38, %39 : vector<32x8xf32>
    %41 = math.exp %38 : vector<32x8xf32>
    %cst_20 = arith.constant 1.000000e+00 : f32
    %42 = vector.broadcast %cst_20 : f32 to vector<32x8xf32>
    %43 = arith.subf %41, %42 : vector<32x8xf32>
    %44 = arith.select %40, %38, %43 : vector<32x8xi1>, vector<32x8xf32>
    %45 = arith.truncf %44 : vector<32x8xf32> to vector<32x8xbf16>
    %46 = vector.extract_strided_slice %11 {offsets = [0, 0], sizes = [8, 4], strides = [1, 1]} : vector<32x4xf32> to vector<8x4xf32>
    %47 = arith.truncf %46 : vector<8x4xf32> to vector<8x4xbf16>
    %cst_21 = arith.constant dense<0.000000e+00> : vector<32x4xf32>
    %48 = tpu.matmul %45, %47, %cst_21 {dimension_numbers = #tpu.dot_dimension_numbers<[1], [0], [0], [1], [0, 0, 1, 1], [], []>} : vector<32x8xbf16>, vector<8x4xbf16>, vector<32x4xf32> -> vector<32x4xf32>
    %49 = arith.addf %12, %48 : vector<32x4xf32>
    %50 = vector.extract_strided_slice %7 {offsets = [0, 1], sizes = [32, 1], strides = [1, 1]} : vector<32x4xf32> to vector<32x1xf32>
    %51 = vector.extract_strided_slice %9 {offsets = [1, 0], sizes = [1, 32], strides = [1, 1]} : vector<4x32xf32> to vector<1x32xf32>
    %52 = vector.extract_strided_slice %10 {offsets = [0, 8], sizes = [32, 8], strides = [1, 1]} : vector<32x32xbf16> to vector<32x8xbf16>
    %53 = vector.broadcast %50 : vector<32x1xf32> to vector<32x32xf32>
    %54 = vector.broadcast %51 : vector<1x32xf32> to vector<32x32xf32>
    %55 = arith.addf %53, %54 : vector<32x32xf32>
    %cst_22 = arith.constant 2.000000e-01 : f32
    %56 = vector.broadcast %cst_22 : f32 to vector<32x32xf32>
    %57 = arith.mulf %56, %55 : vector<32x32xf32>
    %58 = arith.maximumf %55, %57 : vector<32x32xf32>
    %59 = arith.addf %58, %0 : vector<32x32xf32>
    %cst_23 = arith.constant dense<0xFF800000> : vector<32xf32>
    %60 = vector.multi_reduction <maximumf>, %59, %cst_23 [1] : vector<32x32xf32> to vector<32xf32>
    %61 = vector.shape_cast %60 : vector<32xf32> to vector<32x1xf32>
    %62 = vector.broadcast %61 : vector<32x1xf32> to vector<32x32xf32>
    %63 = arith.subf %59, %62 : vector<32x32xf32>
    %64 = math.exp %63 : vector<32x32xf32>
    %cst_24 = arith.constant dense<0.000000e+00> : vector<32xf32>
    %65 = vector.multi_reduction <add>, %64, %cst_24 [1] : vector<32x32xf32> to vector<32xf32>
    %66 = vector.shape_cast %65 : vector<32xf32> to vector<32x1xf32>
    %67 = tpu.reciprocal %66 {approx = true} : vector<32x1xf32> -> vector<32x1xf32>
    %68 = arith.mulf %66, %67 : vector<32x1xf32>
    %cst_25 = arith.constant 2.000000e+00 : f32
    %69 = vector.broadcast %cst_25 : f32 to vector<32x1xf32>
    %70 = arith.subf %69, %68 : vector<32x1xf32>
    %71 = arith.mulf %67, %70 : vector<32x1xf32>
    %72 = vector.broadcast %71 : vector<32x1xf32> to vector<32x32xf32>
    %73 = arith.mulf %64, %72 : vector<32x32xf32>
    %74 = arith.truncf %73 : vector<32x32xf32> to vector<32x32xbf16>
    %cst_26 = arith.constant dense<0.000000e+00> : vector<32x8xf32>
    %75 = tpu.matmul %74, %52, %cst_26 {dimension_numbers = #tpu.dot_dimension_numbers<[1], [0], [0], [1], [0, 0, 1, 1], [], []>} : vector<32x32xbf16>, vector<32x8xbf16>, vector<32x8xf32> -> vector<32x8xf32>
    %cst_27 = arith.constant 0.000000e+00 : f32
    %76 = vector.broadcast %cst_27 : f32 to vector<32x8xf32>
    %77 = arith.cmpf ogt, %75, %76 : vector<32x8xf32>
    %78 = math.exp %75 : vector<32x8xf32>
    %cst_28 = arith.constant 1.000000e+00 : f32
    %79 = vector.broadcast %cst_28 : f32 to vector<32x8xf32>
    %80 = arith.subf %78, %79 : vector<32x8xf32>
    %81 = arith.select %77, %75, %80 : vector<32x8xi1>, vector<32x8xf32>
    %82 = arith.truncf %81 : vector<32x8xf32> to vector<32x8xbf16>
    %83 = vector.extract_strided_slice %11 {offsets = [8, 0], sizes = [8, 4], strides = [1, 1]} : vector<32x4xf32> to vector<8x4xf32>
    %84 = arith.truncf %83 : vector<8x4xf32> to vector<8x4xbf16>
    %cst_29 = arith.constant dense<0.000000e+00> : vector<32x4xf32>
    %85 = tpu.matmul %82, %84, %cst_29 {dimension_numbers = #tpu.dot_dimension_numbers<[1], [0], [0], [1], [0, 0, 1, 1], [], []>} : vector<32x8xbf16>, vector<8x4xbf16>, vector<32x4xf32> -> vector<32x4xf32>
    %86 = arith.addf %49, %85 : vector<32x4xf32>
    %87 = vector.extract_strided_slice %7 {offsets = [0, 2], sizes = [32, 1], strides = [1, 1]} : vector<32x4xf32> to vector<32x1xf32>
    %88 = vector.extract_strided_slice %9 {offsets = [2, 0], sizes = [1, 32], strides = [1, 1]} : vector<4x32xf32> to vector<1x32xf32>
    %89 = vector.extract_strided_slice %10 {offsets = [0, 16], sizes = [32, 8], strides = [1, 1]} : vector<32x32xbf16> to vector<32x8xbf16>
    %90 = vector.broadcast %87 : vector<32x1xf32> to vector<32x32xf32>
    %91 = vector.broadcast %88 : vector<1x32xf32> to vector<32x32xf32>
    %92 = arith.addf %90, %91 : vector<32x32xf32>
    %cst_30 = arith.constant 2.000000e-01 : f32
    %93 = vector.broadcast %cst_30 : f32 to vector<32x32xf32>
    %94 = arith.mulf %93, %92 : vector<32x32xf32>
    %95 = arith.maximumf %92, %94 : vector<32x32xf32>
    %96 = arith.addf %95, %0 : vector<32x32xf32>
    %cst_31 = arith.constant dense<0xFF800000> : vector<32xf32>
    %97 = vector.multi_reduction <maximumf>, %96, %cst_31 [1] : vector<32x32xf32> to vector<32xf32>
    %98 = vector.shape_cast %97 : vector<32xf32> to vector<32x1xf32>
    %99 = vector.broadcast %98 : vector<32x1xf32> to vector<32x32xf32>
    %100 = arith.subf %96, %99 : vector<32x32xf32>
    %101 = math.exp %100 : vector<32x32xf32>
    %cst_32 = arith.constant dense<0.000000e+00> : vector<32xf32>
    %102 = vector.multi_reduction <add>, %101, %cst_32 [1] : vector<32x32xf32> to vector<32xf32>
    %103 = vector.shape_cast %102 : vector<32xf32> to vector<32x1xf32>
    %104 = tpu.reciprocal %103 {approx = true} : vector<32x1xf32> -> vector<32x1xf32>
    %105 = arith.mulf %103, %104 : vector<32x1xf32>
    %cst_33 = arith.constant 2.000000e+00 : f32
    %106 = vector.broadcast %cst_33 : f32 to vector<32x1xf32>
    %107 = arith.subf %106, %105 : vector<32x1xf32>
    %108 = arith.mulf %104, %107 : vector<32x1xf32>
    %109 = vector.broadcast %108 : vector<32x1xf32> to vector<32x32xf32>
    %110 = arith.mulf %101, %109 : vector<32x32xf32>
    %111 = arith.truncf %110 : vector<32x32xf32> to vector<32x32xbf16>
    %cst_34 = arith.constant dense<0.000000e+00> : vector<32x8xf32>
    %112 = tpu.matmul %111, %89, %cst_34 {dimension_numbers = #tpu.dot_dimension_numbers<[1], [0], [0], [1], [0, 0, 1, 1], [], []>} : vector<32x32xbf16>, vector<32x8xbf16>, vector<32x8xf32> -> vector<32x8xf32>
    %cst_35 = arith.constant 0.000000e+00 : f32
    %113 = vector.broadcast %cst_35 : f32 to vector<32x8xf32>
    %114 = arith.cmpf ogt, %112, %113 : vector<32x8xf32>
    %115 = math.exp %112 : vector<32x8xf32>
    %cst_36 = arith.constant 1.000000e+00 : f32
    %116 = vector.broadcast %cst_36 : f32 to vector<32x8xf32>
    %117 = arith.subf %115, %116 : vector<32x8xf32>
    %118 = arith.select %114, %112, %117 : vector<32x8xi1>, vector<32x8xf32>
    %119 = arith.truncf %118 : vector<32x8xf32> to vector<32x8xbf16>
    %120 = vector.extract_strided_slice %11 {offsets = [16, 0], sizes = [8, 4], strides = [1, 1]} : vector<32x4xf32> to vector<8x4xf32>
    %121 = arith.truncf %120 : vector<8x4xf32> to vector<8x4xbf16>
    %cst_37 = arith.constant dense<0.000000e+00> : vector<32x4xf32>
    %122 = tpu.matmul %119, %121, %cst_37 {dimension_numbers = #tpu.dot_dimension_numbers<[1], [0], [0], [1], [0, 0, 1, 1], [], []>} : vector<32x8xbf16>, vector<8x4xbf16>, vector<32x4xf32> -> vector<32x4xf32>
    %123 = arith.addf %86, %122 : vector<32x4xf32>
    %124 = vector.extract_strided_slice %7 {offsets = [0, 3], sizes = [32, 1], strides = [1, 1]} : vector<32x4xf32> to vector<32x1xf32>
    %125 = vector.extract_strided_slice %9 {offsets = [3, 0], sizes = [1, 32], strides = [1, 1]} : vector<4x32xf32> to vector<1x32xf32>
    %126 = vector.extract_strided_slice %10 {offsets = [0, 24], sizes = [32, 8], strides = [1, 1]} : vector<32x32xbf16> to vector<32x8xbf16>
    %127 = vector.broadcast %124 : vector<32x1xf32> to vector<32x32xf32>
    %128 = vector.broadcast %125 : vector<1x32xf32> to vector<32x32xf32>
    %129 = arith.addf %127, %128 : vector<32x32xf32>
    %cst_38 = arith.constant 2.000000e-01 : f32
    %130 = vector.broadcast %cst_38 : f32 to vector<32x32xf32>
    %131 = arith.mulf %130, %129 : vector<32x32xf32>
    %132 = arith.maximumf %129, %131 : vector<32x32xf32>
    %133 = arith.addf %132, %0 : vector<32x32xf32>
    %cst_39 = arith.constant dense<0xFF800000> : vector<32xf32>
    %134 = vector.multi_reduction <maximumf>, %133, %cst_39 [1] : vector<32x32xf32> to vector<32xf32>
    %135 = vector.shape_cast %134 : vector<32xf32> to vector<32x1xf32>
    %136 = vector.broadcast %135 : vector<32x1xf32> to vector<32x32xf32>
    %137 = arith.subf %133, %136 : vector<32x32xf32>
    %138 = math.exp %137 : vector<32x32xf32>
    %cst_40 = arith.constant dense<0.000000e+00> : vector<32xf32>
    %139 = vector.multi_reduction <add>, %138, %cst_40 [1] : vector<32x32xf32> to vector<32xf32>
    %140 = vector.shape_cast %139 : vector<32xf32> to vector<32x1xf32>
    %141 = tpu.reciprocal %140 {approx = true} : vector<32x1xf32> -> vector<32x1xf32>
    %142 = arith.mulf %140, %141 : vector<32x1xf32>
    %cst_41 = arith.constant 2.000000e+00 : f32
    %143 = vector.broadcast %cst_41 : f32 to vector<32x1xf32>
    %144 = arith.subf %143, %142 : vector<32x1xf32>
    %145 = arith.mulf %141, %144 : vector<32x1xf32>
    %146 = vector.broadcast %145 : vector<32x1xf32> to vector<32x32xf32>
    %147 = arith.mulf %138, %146 : vector<32x32xf32>
    %148 = arith.truncf %147 : vector<32x32xf32> to vector<32x32xbf16>
    %cst_42 = arith.constant dense<0.000000e+00> : vector<32x8xf32>
    %149 = tpu.matmul %148, %126, %cst_42 {dimension_numbers = #tpu.dot_dimension_numbers<[1], [0], [0], [1], [0, 0, 1, 1], [], []>} : vector<32x32xbf16>, vector<32x8xbf16>, vector<32x8xf32> -> vector<32x8xf32>
    %cst_43 = arith.constant 0.000000e+00 : f32
    %150 = vector.broadcast %cst_43 : f32 to vector<32x8xf32>
    %151 = arith.cmpf ogt, %149, %150 : vector<32x8xf32>
    %152 = math.exp %149 : vector<32x8xf32>
    %cst_44 = arith.constant 1.000000e+00 : f32
    %153 = vector.broadcast %cst_44 : f32 to vector<32x8xf32>
    %154 = arith.subf %152, %153 : vector<32x8xf32>
    %155 = arith.select %151, %149, %154 : vector<32x8xi1>, vector<32x8xf32>
    %156 = arith.truncf %155 : vector<32x8xf32> to vector<32x8xbf16>
    %157 = vector.extract_strided_slice %11 {offsets = [24, 0], sizes = [8, 4], strides = [1, 1]} : vector<32x4xf32> to vector<8x4xf32>
    %158 = arith.truncf %157 : vector<8x4xf32> to vector<8x4xbf16>
    %cst_45 = arith.constant dense<0.000000e+00> : vector<32x4xf32>
    %159 = tpu.matmul %156, %158, %cst_45 {dimension_numbers = #tpu.dot_dimension_numbers<[1], [0], [0], [1], [0, 0, 1, 1], [], []>} : vector<32x8xbf16>, vector<8x4xbf16>, vector<32x4xf32> -> vector<32x4xf32>
    %160 = arith.addf %123, %159 : vector<32x4xf32>
    %c0_46 = arith.constant 0 : index
    %c0_47 = arith.constant 0 : index
    %161 = vector.load %arg6[%c0_46, %c0_47] : memref<2x4xf32, #tpu.memory_space<vmem>>, vector<2x4xf32>
    %162 = vector.extract_strided_slice %161 {offsets = [0, 0], sizes = [1, 4], strides = [1, 1]} : vector<2x4xf32> to vector<1x4xf32>
    %cst_48 = arith.constant dense<0.000000e+00> : vector<32x1xf32>
    %163 = tpu.matmul %160, %162, %cst_48 {dimension_numbers = #tpu.dot_dimension_numbers<[1], [1], [0], [0], [0, 0, 1, 0], [], []>} : vector<32x4xf32>, vector<1x4xf32>, vector<32x1xf32> -> vector<32x1xf32>
    %164 = vector.extract_strided_slice %161 {offsets = [1, 0], sizes = [1, 4], strides = [1, 1]} : vector<2x4xf32> to vector<1x4xf32>
    %cst_49 = arith.constant dense<0.000000e+00> : vector<1x32xf32>
    %165 = tpu.matmul %164, %160, %cst_49 {dimension_numbers = #tpu.dot_dimension_numbers<[1], [1], [0], [0], [0, 0, 1, 0], [], []>} : vector<1x4xf32>, vector<32x4xf32>, vector<1x32xf32> -> vector<1x32xf32>
    %166 = arith.truncf %160 : vector<32x4xf32> to vector<32x4xbf16>
    %167 = vector.broadcast %163 : vector<32x1xf32> to vector<32x32xf32>
    %168 = vector.broadcast %165 : vector<1x32xf32> to vector<32x32xf32>
    %169 = arith.addf %167, %168 : vector<32x32xf32>
    %cst_50 = arith.constant 2.000000e-01 : f32
    %170 = vector.broadcast %cst_50 : f32 to vector<32x32xf32>
    %171 = arith.mulf %170, %169 : vector<32x32xf32>
    %172 = arith.maximumf %169, %171 : vector<32x32xf32>
    %173 = arith.addf %172, %0 : vector<32x32xf32>
    %cst_51 = arith.constant dense<0xFF800000> : vector<32xf32>
    %174 = vector.multi_reduction <maximumf>, %173, %cst_51 [1] : vector<32x32xf32> to vector<32xf32>
    %175 = vector.shape_cast %174 : vector<32xf32> to vector<32x1xf32>
    %176 = vector.broadcast %175 : vector<32x1xf32> to vector<32x32xf32>
    %177 = arith.subf %173, %176 : vector<32x32xf32>
    %178 = math.exp %177 : vector<32x32xf32>
    %cst_52 = arith.constant dense<0.000000e+00> : vector<32xf32>
    %179 = vector.multi_reduction <add>, %178, %cst_52 [1] : vector<32x32xf32> to vector<32xf32>
    %180 = vector.shape_cast %179 : vector<32xf32> to vector<32x1xf32>
    %181 = tpu.reciprocal %180 {approx = true} : vector<32x1xf32> -> vector<32x1xf32>
    %182 = arith.mulf %180, %181 : vector<32x1xf32>
    %cst_53 = arith.constant 2.000000e+00 : f32
    %183 = vector.broadcast %cst_53 : f32 to vector<32x1xf32>
    %184 = arith.subf %183, %182 : vector<32x1xf32>
    %185 = arith.mulf %181, %184 : vector<32x1xf32>
    %186 = vector.broadcast %185 : vector<32x1xf32> to vector<32x32xf32>
    %187 = arith.mulf %178, %186 : vector<32x32xf32>
    %188 = arith.truncf %187 : vector<32x32xf32> to vector<32x32xbf16>
    %cst_54 = arith.constant dense<0.000000e+00> : vector<32x4xf32>
    %189 = tpu.matmul %188, %166, %cst_54 {dimension_numbers = #tpu.dot_dimension_numbers<[1], [0], [0], [1], [0, 0, 1, 1], [], []>} : vector<32x32xbf16>, vector<32x4xbf16>, vector<32x4xf32> -> vector<32x4xf32>
    %cst_55 = arith.constant 0.000000e+00 : f32
    %190 = vector.broadcast %cst_55 : f32 to vector<32x4xf32>
    %191 = arith.cmpf ogt, %189, %190 : vector<32x4xf32>
    %192 = math.exp %189 : vector<32x4xf32>
    %cst_56 = arith.constant 1.000000e+00 : f32
    %193 = vector.broadcast %cst_56 : f32 to vector<32x4xf32>
    %194 = arith.subf %192, %193 : vector<32x4xf32>
    %195 = arith.select %191, %189, %194 : vector<32x4xi1>, vector<32x4xf32>
    %c0_57 = arith.constant 0 : index
    %c0_58 = arith.constant 0 : index
    %196 = vector.load %arg7[%c0_57, %c0_58] : memref<32x4xf32, #tpu.memory_space<vmem>>, vector<32x4xf32>
    tpu.vector_store %arg7[%c0_57, %c0_58], %195 {strides = array<i32>} : memref<32x4xf32, #tpu.memory_space<vmem>>, vector<32x4xf32>,
    return
  }
}

</mosaic_0001>

<llo_original>
// kernel: tpu_custom_call.1
$region0: #{tpu_custom_call.1}
  #allocation0 [shape = 'u32[]', space=smem, size = 0x4, offset = 0x4, fixed_abs, tag = 'smem constant byte address 0x4 - core index']
  #allocation1 [shape = 'u32[144,128]{1,0:T(1,128)}', space=vmem, size = 0x12000, scoped, tag = 'internal scratch']
  %s0 = inlined_call_operand.vmem [shape: f32[32,16], index: 0, kind: input, shape index: {}]
  %s1 = inlined_call_operand.vmem [shape: f32[16,32], index: 1, kind: input, shape index: {}]
  %s2 = inlined_call_operand.vmem [shape: f32[32,4], index: 2, kind: input, shape index: {}]
  %s3 = inlined_call_operand.vmem [shape: f32[4,32], index: 3, kind: input, shape index: {}]
  %s4 = inlined_call_operand.vmem [shape: f32[32,32], index: 4, kind: input, shape index: {}]
  %s5 = inlined_call_operand.vmem [shape: f32[32,4], index: 5, kind: input, shape index: {}]
  %s6 = inlined_call_operand.vmem [shape: f32[2,4], index: 6, kind: input, shape index: {}]
  %s7 = inlined_call_operand.vmem [shape: f32[32,4], index: 7, kind: output, shape index: {}]
  %s8 = sld [smem:[#allocation0]]
  $region38: #{tpu_custom_call.1} parent=0
    _
  %s10 = ssub.s32 1, %s8
  %s11 = scalar_select 0, %s10, %s8
  // Predicated region
  $region2: #{tpu_custom_call.1} parent=0 // pred_check
    _
  $region3: #{tpu_custom_call.1} parent=0 // pred_check_branch
    %13 = sbr.rel (0) target = $region5
  $region4: #{tpu_custom_call.1} parent=0 // pred_region
    _
  $region5: #{tpu_custom_call.1} parent=0 // pred_fallthru
    _
  // Predicated region
  $region6: #{tpu_custom_call.1} parent=0 // pred_check
    _
  $region7: #{tpu_custom_call.1} parent=0 // pred_check_branch
    %15 = sbr.rel (0) target = $region9
  $region8: #{tpu_custom_call.1} parent=0 // pred_region
    _
  $region9: #{tpu_custom_call.1} parent=0 // pred_fallthru
    _
  // Predicated region
  $region10: #{tpu_custom_call.1} parent=0 // pred_check
    _
  $region11: #{tpu_custom_call.1} parent=0 // pred_check_branch
    %17 = sbr.rel (0) target = $region13
  $region12: #{tpu_custom_call.1} parent=0 // pred_region
    _
  $region13: #{tpu_custom_call.1} parent=0 // pred_fallthru
    _
  // Predicated region
  $region14: #{tpu_custom_call.1} parent=0 // pred_check
    _
  $region15: #{tpu_custom_call.1} parent=0 // pred_check_branch
    %19 = sbr.rel (0) target = $region17
  $region16: #{tpu_custom_call.1} parent=0 // pred_region
    _
  $region17: #{tpu_custom_call.1} parent=0 // pred_fallthru
    _
  // Predicated region
  $region18: #{tpu_custom_call.1} parent=0 // pred_check
    _
  $region19: #{tpu_custom_call.1} parent=0 // pred_check_branch
    %21 = sbr.rel (0) target = $region21
  $region20: #{tpu_custom_call.1} parent=0 // pred_region
    _
  $region21: #{tpu_custom_call.1} parent=0 // pred_fallthru
    _
  // Predicated region
  $region22: #{tpu_custom_call.1} parent=0 // pred_check
    _
  $region23: #{tpu_custom_call.1} parent=0 // pred_check_branch
    %23 = sbr.rel (0) target = $region25
  $region24: #{tpu_custom_call.1} parent=0 // pred_region
    _
  $region25: #{tpu_custom_call.1} parent=0 // pred_fallthru
    _
  // Predicated region
  $region26: #{tpu_custom_call.1} parent=0 // pred_check
    _
  $region27: #{tpu_custom_call.1} parent=0 // pred_check_branch
    %25 = sbr.rel (0) target = $region29
  $region28: #{tpu_custom_call.1} parent=0 // pred_region
    _
  $region29: #{tpu_custom_call.1} parent=0 // pred_fallthru
    _
  %v27 = vld [vmem:[%s4] sm:$0xff]
  %v28 = vld [vmem:[%s4 + $0x8] sm:$0xff]
  %v29 = vld [vmem:[%s4 + $0x10] sm:$0xff]
  %v30 = vld [vmem:[%s4 + $0x18] sm:$0xff]
  %v31 = vld [vmem:[%s0] sm:$0xff]
  %v32 = vld [vmem:[%s0 + $0x8] sm:$0xff]
  %v33 = vld [vmem:[%s0 + $0x10] sm:$0xff]
  %v34 = vld [vmem:[%s0 + $0x18] sm:$0xff]
  %v35 = vpack.c.bf16 %v32, %v31
  %v36 = vpack.c.bf16 %v34, %v33
  %v37 = vld [vmem:[%s1] sm:$0xff]
  %v38 = vld [vmem:[%s1 + $0x8] sm:$0xff]
  %v39 = vpack.c.bf16 %v38, %v37
  %vm40 = vcmask 130048
  %v42 = vsel %vm40, %v35, 0
  %v45 = vsel %vm40, %v36, 0
  %47 = vmatprep.subr.bf16.mxu0 0
  %48 = vmatpush1.bf16.msra.mxu0 %v39
  %49 = vmatprep.subr.bf16.mxu0 0
  %50 = vmatpush1.bf16.msra.mxu0 0
  %51 = vmatprep.subr.bf16.mxu0 0
  %52 = vmatpush1.bf16.msra.mxu0 0
  %53 = vmatprep.subr.bf16.mxu0 0
  %54 = vmatpush1.bf16.msra.mxu0 0
  %55 = vmatprep.subr.bf16.mxu0 0
  %56 = vmatpush1.bf16.msra.mxu0 0
  %57 = vmatprep.subr.bf16.mxu0 0
  %58 = vmatpush1.bf16.msra.mxu0 0
  %59 = vmatprep.subr.bf16.mxu0 0
  %60 = vmatpush1.bf16.msra.mxu0 0
  %61 = vmatprep.subr.bf16.mxu0 0
  %62 = vmatpush1.bf16.msra.mxu0 0
  %63 = vmatprep.subr.bf16.mxu0 0
  %64 = vmatpush1.bf16.msra.mxu0 0
  %65 = vmatprep.subr.bf16.mxu0 0
  %66 = vmatpush1.bf16.msra.mxu0 0
  %67 = vmatprep.subr.bf16.mxu0 0
  %68 = vmatpush1.bf16.msra.mxu0 0
  %69 = vmatprep.subr.bf16.mxu0 0
  %70 = vmatpush1.bf16.msra.mxu0 0
  %71 = vmatprep.subr.bf16.mxu0 0
  %72 = vmatpush1.bf16.msra.mxu0 0
  %73 = vmatprep.subr.bf16.mxu0 0
  %74 = vmatpush1.bf16.msra.mxu0 0
  %75 = vmatprep.subr.bf16.mxu0 0
  %76 = vmatpush1.bf16.msra.mxu0 0
  %77 = vmatprep.subr.bf16.mxu0 0
  %78 = vmatpush1.bf16.msra.mxu0 0
  %79 = vmatprep.mubr.bf16.mxu0 0
  %80 = vmatmul.mubr.bf16.gmra.mrb[0].mxu0 %v42
  %v81 = vpop.f32.mrb[0].mxu0
  %v82 = vadd.f32 0.0, %v81
  %v83 = vpop.f32.mrb[0].mxu0
  %v84 = vpop.f32.mrb[0].mxu0
  %v85 = vadd.f32 0.0, %v84
  %v86 = vpop.f32.mrb[0].mxu0
  %87 = vmatprep.mubr.bf16.mxu0 0
  %88 = vmatmul.mubr.bf16.gmra.mrb[0].mxu0 %v45
  %v89 = vpop.f32.mrb[0].mxu0
  %v90 = vadd.f32 0.0, %v89
  %v91 = vpop.f32.mrb[0].mxu0
  %v92 = vpop.f32.mrb[0].mxu0
  %v93 = vadd.f32 0.0, %v92
  %v94 = vpop.f32.mrb[0].mxu0
  %95 = vdwg.mxu0
  %v96 = vld [vmem:[%s2] sm:$0xff]
  %v97 = vld [vmem:[%s2 + $0x8] sm:$0xff]
  %v98 = vld [vmem:[%s2 + $0x10] sm:$0xff]
  %v99 = vld [vmem:[%s2 + $0x18] sm:$0xff]
  %vm100 = vcmask 261120
  %v102 = vsel %vm100, %v82, 0
  %v105 = vsel %vm100, %v85, 0
  %v108 = vsel %vm100, %v90, 0
  %v111 = vsel %vm100, %v93, 0
  %113 = vmatprep.subr.mxu0 0.0
  %114 = vmatpush1.msra.mxu0 %v96
  %115 = vmatprep.subr.mxu0 0.0
  %116 = vmatpush1.msra.mxu0 %v97
  %117 = vmatprep.subr.mxu0 0.0
  %118 = vmatpush1.msra.mxu0 %v98
  %119 = vmatprep.subr.mxu0 0.0
  %120 = vmatpush1.msra.mxu0 %v99
  %121 = vmatprep.subr.mxu0 0.0
  %122 = vmatpush1.msra.mxu0 0.0
  %123 = vmatprep.subr.mxu0 0.0
  %124 = vmatpush1.msra.mxu0 0.0
  %125 = vmatprep.subr.mxu0 0.0
  %126 = vmatpush1.msra.mxu0 0.0
  %127 = vmatprep.subr.mxu0 0.0
  %128 = vmatpush1.msra.mxu0 0.0
  %129 = vmatprep.subr.mxu0 0.0
  %130 = vmatpush1.msra.mxu0 0.0
  %131 = vmatprep.subr.mxu0 0.0
  %132 = vmatpush1.msra.mxu0 0.0
  %133 = vmatprep.subr.mxu0 0.0
  %134 = vmatpush1.msra.mxu0 0.0
  %135 = vmatprep.subr.mxu0 0.0
  %136 = vmatpush1.msra.mxu0 0.0
  %137 = vmatprep.subr.mxu0 0.0
  %138 = vmatpush1.msra.mxu0 0.0
  %139 = vmatprep.subr.mxu0 0.0
  %140 = vmatpush1.msra.mxu0 0.0
  %141 = vmatprep.subr.mxu0 0.0
  %142 = vmatpush1.msra.mxu0 0.0
  %143 = vmatprep.subr.mxu0 0.0
  %144 = vmatpush1.msra.mxu0 0.0
  %145 = vmatprep.subr.mxu0 0.0
  %146 = vmatpush1.msra.mxu0 0.0
  %147 = vmatprep.subr.mxu0 0.0
  %148 = vmatpush1.msra.mxu0 0.0
  %149 = vmatprep.subr.mxu0 0.0
  %150 = vmatpush1.msra.mxu0 0.0
  %151 = vmatprep.subr.mxu0 0.0
  %152 = vmatpush1.msra.mxu0 0.0
  %153 = vmatprep.subr.mxu0 0.0
  %154 = vmatpush1.msra.mxu0 0.0
  %155 = vmatprep.subr.mxu0 0.0
  %156 = vmatpush1.msra.mxu0 0.0
  %157 = vmatprep.subr.mxu0 0.0
  %158 = vmatpush1.msra.mxu0 0.0
  %159 = vmatprep.subr.mxu0 0.0
  %160 = vmatpush1.msra.mxu0 0.0
  %161 = vmatprep.subr.mxu0 0.0
  %162 = vmatpush1.msra.mxu0 0.0
  %163 = vmatprep.subr.mxu0 0.0
  %164 = vmatpush1.msra.mxu0 0.0
  %165 = vmatprep.subr.mxu0 0.0
  %166 = vmatpush1.msra.mxu0 0.0
  %167 = vmatprep.subr.mxu0 0.0
  %168 = vmatpush1.msra.mxu0 0.0
  %169 = vmatprep.subr.mxu0 0.0
  %170 = vmatpush1.msra.mxu0 0.0
  %171 = vmatprep.subr.mxu0 0.0
  %172 = vmatpush1.msra.mxu0 0.0
  %173 = vmatprep.subr.mxu0 0.0
  %174 = vmatpush1.msra.mxu0 0.0
  %175 = vmatprep.subr.mxu0 0.0
  %176 = vmatpush1.msra.mxu0 0.0
  %177 = vmatprep.mubr.f32.mxu0 0.0
  %178 = vmatmul.mubr.f32.gmra.mrb[0].mxu0 %v102
  %v179 = vpop.f32.mrb[0].mxu0
  %v180 = vadd.f32 0.0, %v179
  %v181 = vpop.f32.mrb[0].mxu0
  %182 = vmatprep.mubr.f32.mxu0 0.0
  %183 = vmatmul.mubr.f32.gmra.mrb[0].mxu0 %v105
  %v184 = vpop.f32.mrb[0].mxu0
  %v185 = vadd.f32 0.0, %v184
  %v186 = vpop.f32.mrb[0].mxu0
  %187 = vmatprep.mubr.f32.mxu0 0.0
  %188 = vmatmul.mubr.f32.gmra.mrb[0].mxu0 %v108
  %v189 = vpop.f32.mrb[0].mxu0
  %v190 = vadd.f32 0.0, %v189
  %v191 = vpop.f32.mrb[0].mxu0
  %192 = vmatprep.mubr.f32.mxu0 0.0
  %193 = vmatmul.mubr.f32.gmra.mrb[0].mxu0 %v111
  %v194 = vpop.f32.mrb[0].mxu0
  %v195 = vadd.f32 0.0, %v194
  %v196 = vpop.f32.mrb[0].mxu0
  %197 = vdwg.mxu0
  %v198 = vld [vmem:[%s3] sm:$0xf]
  %v200 = vsel %vm100, %v198, 0
  %202 = vmatprep.subr.mxu0 0.0
  %203 = vmatpush1.xpose.msra.mxu0 %v102
  %204 = vmatprep.subr.mxu0 0.0
  %205 = vmatpush1.xpose.msra.mxu0 %v105
  %206 = vmatprep.subr.mxu0 0.0
  %207 = vmatpush1.xpose.msra.mxu0 %v108
  %208 = vmatprep.subr.mxu0 0.0
  %209 = vmatpush1.xpose.msra.mxu0 %v111
  %210 = vmatprep.subr.mxu0 0.0
  %211 = vmatpush1.xpose.msra.mxu0 0.0
  %212 = vmatprep.subr.mxu0 0.0
  %213 = vmatpush1.xpose.msra.mxu0 0.0
  %214 = vmatprep.subr.mxu0 0.0
  %215 = vmatpush1.xpose.msra.mxu0 0.0
  %216 = vmatprep.subr.mxu0 0.0
  %217 = vmatpush1.xpose.msra.mxu0 0.0
  %218 = vmatprep.subr.mxu0 0.0
  %219 = vmatpush1.xpose.msra.mxu0 0.0
  %220 = vmatprep.subr.mxu0 0.0
  %221 = vmatpush1.xpose.msra.mxu0 0.0
  %222 = vmatprep.subr.mxu0 0.0
  %223 = vmatpush1.xpose.msra.mxu0 0.0
  %224 = vmatprep.subr.mxu0 0.0
  %225 = vmatpush1.xpose.msra.mxu0 0.0
  %226 = vmatprep.subr.mxu0 0.0
  %227 = vmatpush1.xpose.msra.mxu0 0.0
  %228 = vmatprep.subr.mxu0 0.0
  %229 = vmatpush1.xpose.msra.mxu0 0.0
  %230 = vmatprep.subr.mxu0 0.0
  %231 = vmatpush1.xpose.msra.mxu0 0.0
  %232 = vmatprep.subr.mxu0 0.0
  %233 = vmatpush1.xpose.msra.mxu0 0.0
  %234 = vmatprep.subr.mxu0 0.0
  %235 = vmatpush1.xpose.msra.mxu0 0.0
  %236 = vmatprep.subr.mxu0 0.0
  %237 = vmatpush1.xpose.msra.mxu0 0.0
  %238 = vmatprep.subr.mxu0 0.0
  %239 = vmatpush1.xpose.msra.mxu0 0.0
  %240 = vmatprep.subr.mxu0 0.0
  %241 = vmatpush1.xpose.msra.mxu0 0.0
  %242 = vmatprep.subr.mxu0 0.0
  %243 = vmatpush1.xpose.msra.mxu0 0.0
  %244 = vmatprep.subr.mxu0 0.0
  %245 = vmatpush1.xpose.msra.mxu0 0.0
  %246 = vmatprep.subr.mxu0 0.0
  %247 = vmatpush1.xpose.msra.mxu0 0.0
  %248 = vmatprep.subr.mxu0 0.0
  %249 = vmatpush1.xpose.msra.mxu0 0.0
  %250 = vmatprep.subr.mxu0 0.0
  %251 = vmatpush1.xpose.msra.mxu0 0.0
  %252 = vmatprep.subr.mxu0 0.0
  %253 = vmatpush1.xpose.msra.mxu0 0.0
  %254 = vmatprep.subr.mxu0 0.0
  %255 = vmatpush1.xpose.msra.mxu0 0.0
  %256 = vmatprep.subr.mxu0 0.0
  %257 = vmatpush1.xpose.msra.mxu0 0.0
  %258 = vmatprep.subr.mxu0 0.0
  %259 = vmatpush1.xpose.msra.mxu0 0.0
  %260 = vmatprep.subr.mxu0 0.0
  %261 = vmatpush1.xpose.msra.mxu0 0.0
  %262 = vmatprep.subr.mxu0 0.0
  %263 = vmatpush1.xpose.msra.mxu0 0.0
  %264 = vmatprep.subr.mxu0 0.0
  %265 = vmatpush1.xpose.msra.mxu0 0.0
  %266 = vmatprep.mubr.f32.mxu0 0.0
  %267 = vmatmul.mubr.f32.gmra.mrb[0].mxu0 %v200
  %v268 = vpop.f32.mrb[0].mxu0
  %v269 = vadd.f32 0.0, %v268
  %v270 = vpop.f32.mrb[0].mxu0
  %271 = vdwg.mxu0
  %v272 = vpack.c.bf16 %v85, %v82
  %v273 = vpack.c.bf16 %v93, %v90
  %v274 = vld [vmem:[%s5] sm:$0xff]
  %v275 = vld [vmem:[%s5 + $0x8] sm:$0xff]
  %v276 = vld [vmem:[%s5 + $0x10] sm:$0xff]
  %v277 = vld [vmem:[%s5 + $0x18] sm:$0xff]
  %279 = vset.pattern.permute.xlu0 0
  %280 = vperm.xlu0 %279, %v180
  %v281 = vpop.permute.xlu0 %280
  %284 = vset.pattern.permute.xlu0 0
  %285 = vperm.xlu0 %284, %v185
  %v286 = vpop.permute.xlu0 %285
  %289 = vset.pattern.permute.xlu0 0
  %290 = vperm.xlu0 %289, %v190
  %v291 = vpop.permute.xlu0 %290
  %294 = vset.pattern.permute.xlu0 0
  %295 = vperm.xlu0 %294, %v195
  %v296 = vpop.permute.xlu0 %295
  %v298 = vlaneseq
  %v299 = vshrl.u32 %v298, 7
  %v300 = vsub.s32 0, %v299
  %v301 = vrot.slane %v269, %v300
  %v302 = vadd.f32 %v281, %v301
  %v303 = vadd.f32 %v286, %v301
  %v304 = vadd.f32 %v291, %v301
  %v305 = vadd.f32 %v296, %v301
  %v306 = vmul.f32 %v302, 0.2
  %v307 = vmul.f32 %v303, 0.2
  %v308 = vmul.f32 %v304, 0.2
  %v309 = vmul.f32 %v305, 0.2
  %v310 = vmax.f32 %v302, %v306
  %v311 = vmax.f32 %v303, %v307
  %v312 = vmax.f32 %v304, %v308
  %v313 = vmax.f32 %v305, %v309
  %v314 = vadd.f32 %v310, %v27
  %v315 = vadd.f32 %v311, %v28
  %v316 = vadd.f32 %v312, %v29
  %v317 = vadd.f32 %v313, %v30
  %v318 = vsel %vm100, %v314, -inf
  %319 = vmax.xlane.f32.xlu0 %v318
  %v320 = vpop.xlane.xlu0 %319
  %v321 = vsel %vm100, %v315, -inf
  %322 = vmax.xlane.f32.xlu0 %v321
  %v323 = vpop.xlane.xlu0 %322
  %v324 = vsel %vm100, %v316, -inf
  %325 = vmax.xlane.f32.xlu0 %v324
  %v326 = vpop.xlane.xlu0 %325
  %v327 = vsel %vm100, %v317, -inf
  %328 = vmax.xlane.f32.xlu0 %v327
  %v329 = vpop.xlane.xlu0 %328
  %v330 = vsub.f32 %v314, %v320
  %v331 = vsub.f32 %v315, %v323
  %v332 = vsub.f32 %v316, %v326
  %v333 = vsub.f32 %v317, %v329
  %v334 = vmul.f32 %v330, 1.442695
  %v335 = vpow.pop %v334
  %v336 = vmul.f32 %v331, 1.442695
  %v337 = vpow.pop %v336
  %v338 = vmul.f32 %v332, 1.442695
  %v339 = vpow.pop %v338
  %v340 = vmul.f32 %v333, 1.442695
  %v341 = vpow.pop %v340
  %v342 = vsel %vm100, %v335, 0.0
  %343 = vadd.xlane.f32.xlu0 %v342
  %v344 = vpop.xlane.xlu0 %343
  %v345 = vsel %vm100, %v337, 0.0
  %346 = vadd.xlane.f32.xlu0 %v345
  %v347 = vpop.xlane.xlu0 %346
  %v348 = vsel %vm100, %v339, 0.0
  %349 = vadd.xlane.f32.xlu0 %v348
  %v350 = vpop.xlane.xlu0 %349
  %v351 = vsel %vm100, %v341, 0.0
  %352 = vadd.xlane.f32.xlu0 %v351
  %v353 = vpop.xlane.xlu0 %352
  %v354 = vrcp.pop %v344
  %v355 = vrcp.pop %v347
  %v356 = vrcp.pop %v350
  %v357 = vrcp.pop %v353
  %v358 = vmul.f32 %v344, %v354
  %v359 = vmul.f32 %v347, %v355
  %v360 = vmul.f32 %v350, %v356
  %v361 = vmul.f32 %v353, %v357
  %v362 = vsub.f32 2.0, %v358
  %v363 = vsub.f32 2.0, %v359
  %v364 = vsub.f32 2.0, %v360
  %v365 = vsub.f32 2.0, %v361
  %v366 = vmul.f32 %v354, %v362
  %v367 = vmul.f32 %v355, %v363
  %v368 = vmul.f32 %v356, %v364
  %v369 = vmul.f32 %v357, %v365
  %v370 = vmul.f32 %v335, %v366
  %v371 = vmul.f32 %v337, %v367
  %v372 = vmul.f32 %v339, %v368
  %v373 = vmul.f32 %v341, %v369
  %v374 = vpack.c.bf16 %v371, %v370
  %v375 = vpack.c.bf16 %v373, %v372
  %v377 = vsel %vm100, %v374, 0
  %v380 = vsel %vm100, %v375, 0
  %382 = vmatprep.subr.bf16.mxu0 0
  %383 = vmatpush1.bf16.msra.mxu0 %v272
  %384 = vmatprep.subr.bf16.mxu0 0
  %385 = vmatpush1.bf16.msra.mxu0 %v273
  %386 = vmatprep.subr.bf16.mxu0 0
  %387 = vmatpush1.bf16.msra.mxu0 0
  %388 = vmatprep.subr.bf16.mxu0 0
  %389 = vmatpush1.bf16.msra.mxu0 0
  %390 = vmatprep.subr.bf16.mxu0 0
  %391 = vmatpush1.bf16.msra.mxu0 0
  %392 = vmatprep.subr.bf16.mxu0 0
  %393 = vmatpush1.bf16.msra.mxu0 0
  %394 = vmatprep.subr.bf16.mxu0 0
  %395 = vmatpush1.bf16.msra.mxu0 0
  %396 = vmatprep.subr.bf16.mxu0 0
  %397 = vmatpush1.bf16.msra.mxu0 0
  %398 = vmatprep.subr.bf16.mxu0 0
  %399 = vmatpush1.bf16.msra.mxu0 0
  %400 = vmatprep.subr.bf16.mxu0 0
  %401 = vmatpush1.bf16.msra.mxu0 0
  %402 = vmatprep.subr.bf16.mxu0 0
  %403 = vmatpush1.bf16.msra.mxu0 0
  %404 = vmatprep.subr.bf16.mxu0 0
  %405 = vmatpush1.bf16.msra.mxu0 0
  %406 = vmatprep.subr.bf16.mxu0 0
  %407 = vmatpush1.bf16.msra.mxu0 0
  %408 = vmatprep.subr.bf16.mxu0 0
  %409 = vmatpush1.bf16.msra.mxu0 0
  %410 = vmatprep.subr.bf16.mxu0 0
  %411 = vmatpush1.bf16.msra.mxu0 0
  %412 = vmatprep.subr.bf16.mxu0 0
  %413 = vmatpush1.bf16.msra.mxu0 0
  %414 = vmatprep.mubr.bf16.mxu0 0
  %415 = vmatmul.mubr.bf16.gmra.mrb[0].mxu0 %v377
  %v416 = vpop.f32.mrb[0].mxu0
  %v417 = vadd.f32 0.0, %v416
  %v418 = vpop.f32.mrb[0].mxu0
  %v419 = vpop.f32.mrb[0].mxu0
  %v420 = vadd.f32 0.0, %v419
  %v421 = vpop.f32.mrb[0].mxu0
  %422 = vmatprep.mubr.bf16.mxu0 0
  %423 = vmatmul.mubr.bf16.gmra.mrb[0].mxu0 %v380
  %v424 = vpop.f32.mrb[0].mxu0
  %v425 = vadd.f32 0.0, %v424
  %v426 = vpop.f32.mrb[0].mxu0
  %v427 = vpop.f32.mrb[0].mxu0
  %v428 = vadd.f32 0.0, %v427
  %v429 = vpop.f32.mrb[0].mxu0
  %430 = vdwg.mxu0
  %vm431 = vcmp.gt.f32.partialorder %v417, 0.0
  %vm432 = vcmp.gt.f32.partialorder %v420, 0.0
  %vm433 = vcmp.gt.f32.partialorder %v425, 0.0
  %vm434 = vcmp.gt.f32.partialorder %v428, 0.0
  %v435 = vmul.f32 %v417, 1.442695
  %v436 = vpow.pop %v435
  %v437 = vmul.f32 %v420, 1.442695
  %v438 = vpow.pop %v437
  %v439 = vmul.f32 %v425, 1.442695
  %v440 = vpow.pop %v439
  %v441 = vmul.f32 %v428, 1.442695
  %v442 = vpow.pop %v441
  %v443 = vsub.f32 %v436, 1.0
  %v444 = vsub.f32 %v438, 1.0
  %v445 = vsub.f32 %v440, 1.0
  %v446 = vsub.f32 %v442, 1.0
  %v447 = vsel %vm431, %v417, %v443
  %v448 = vsel %vm432, %v420, %v444
  %v449 = vsel %vm433, %v425, %v445
  %v450 = vsel %vm434, %v428, %v446
  %v451 = vpack.c.bf16 %v448, %v447
  %v452 = vpack.c.bf16 %v450, %v449
  %v453 = vpack.c.bf16 %v274, %v274
  %454 = vset.pattern.permute.xlu0 1
  %455 = vperm.xlu0 %454, %v180
  %v456 = vpop.permute.xlu0 %455
  %458 = vset.pattern.permute.xlu0 1
  %459 = vperm.xlu0 %458, %v185
  %v460 = vpop.permute.xlu0 %459
  %462 = vset.pattern.permute.xlu0 1
  %463 = vperm.xlu0 %462, %v190
  %v464 = vpop.permute.xlu0 %463
  %466 = vset.pattern.permute.xlu0 1
  %467 = vperm.xlu0 %466, %v195
  %v468 = vpop.permute.xlu0 %467
  %v470 = vlaneseq
  %v471 = vshrl.u32 %v470, 7
  %v472 = vsub.s32 1, %v471
  %v473 = vrot.slane %v269, %v472
  %v474 = vadd.f32 %v456, %v473
  %v475 = vadd.f32 %v460, %v473
  %v476 = vadd.f32 %v464, %v473
  %v477 = vadd.f32 %v468, %v473
  %v478 = vmul.f32 %v474, 0.2
  %v479 = vmul.f32 %v475, 0.2
  %v480 = vmul.f32 %v476, 0.2
  %v481 = vmul.f32 %v477, 0.2
  %v482 = vmax.f32 %v474, %v478
  %v483 = vmax.f32 %v475, %v479
  %v484 = vmax.f32 %v476, %v480
  %v485 = vmax.f32 %v477, %v481
  %v486 = vadd.f32 %v482, %v27
  %v487 = vadd.f32 %v483, %v28
  %v488 = vadd.f32 %v484, %v29
  %v489 = vadd.f32 %v485, %v30
  %v490 = vsel %vm100, %v486, -inf
  %491 = vmax.xlane.f32.xlu0 %v490
  %v492 = vpop.xlane.xlu0 %491
  %v493 = vsel %vm100, %v487, -inf
  %494 = vmax.xlane.f32.xlu0 %v493
  %v495 = vpop.xlane.xlu0 %494
  %v496 = vsel %vm100, %v488, -inf
  %497 = vmax.xlane.f32.xlu0 %v496
  %v498 = vpop.xlane.xlu0 %497
  %v499 = vsel %vm100, %v489, -inf
  %500 = vmax.xlane.f32.xlu0 %v499
  %v501 = vpop.xlane.xlu0 %500
  %v502 = vsub.f32 %v486, %v492
  %v503 = vsub.f32 %v487, %v495
  %v504 = vsub.f32 %v488, %v498
  %v505 = vsub.f32 %v489, %v501
  %v506 = vmul.f32 %v502, 1.442695
  %v507 = vpow.pop %v506
  %v508 = vmul.f32 %v503, 1.442695
  %v509 = vpow.pop %v508
  %v510 = vmul.f32 %v504, 1.442695
  %v511 = vpow.pop %v510
  %v512 = vmul.f32 %v505, 1.442695
  %v513 = vpow.pop %v512
  %v514 = vsel %vm100, %v507, 0.0
  %515 = vadd.xlane.f32.xlu0 %v514
  %v516 = vpop.xlane.xlu0 %515
  %v517 = vsel %vm100, %v509, 0.0
  %518 = vadd.xlane.f32.xlu0 %v517
  %v519 = vpop.xlane.xlu0 %518
  %v520 = vsel %vm100, %v511, 0.0
  %521 = vadd.xlane.f32.xlu0 %v520
  %v522 = vpop.xlane.xlu0 %521
  %v523 = vsel %vm100, %v513, 0.0
  %524 = vadd.xlane.f32.xlu0 %v523
  %v525 = vpop.xlane.xlu0 %524
  %v526 = vrcp.pop %v516
  %v527 = vrcp.pop %v519
  %v528 = vrcp.pop %v522
  %v529 = vrcp.pop %v525
  %v530 = vmul.f32 %v516, %v526
  %v531 = vmul.f32 %v519, %v527
  %v532 = vmul.f32 %v522, %v528
  %v533 = vmul.f32 %v525, %v529
  %v534 = vsub.f32 2.0, %v530
  %v535 = vsub.f32 2.0, %v531
  %v536 = vsub.f32 2.0, %v532
  %v537 = vsub.f32 2.0, %v533
  %v538 = vmul.f32 %v526, %v534
  %v539 = vmul.f32 %v527, %v535
  %v540 = vmul.f32 %v528, %v536
  %v541 = vmul.f32 %v529, %v537
  %v542 = vmul.f32 %v507, %v538
  %v543 = vmul.f32 %v509, %v539
  %v544 = vmul.f32 %v511, %v540
  %v545 = vmul.f32 %v513, %v541
  %v546 = vpack.c.bf16 %v543, %v542
  %v547 = vpack.c.bf16 %v545, %v544
  %550 = vrot.lane.b32.xlu0 %v272, 120
  %v551 = vpop.permute.xlu0 %550
  %552 = vrot.lane.b32.xlu0 %v273, 120
  %v553 = vpop.permute.xlu0 %552
  %v557 = vsel %vm100, %v546, 0
  %v560 = vsel %vm100, %v547, 0
  %562 = vmatprep.subr.bf16.mxu0 0
  %563 = vmatpush1.bf16.msra.mxu0 %v551
  %564 = vmatprep.subr.bf16.mxu0 0
  %565 = vmatpush1.bf16.msra.mxu0 %v553
  %566 = vmatprep.subr.bf16.mxu0 0
  %567 = vmatpush1.bf16.msra.mxu0 0
  %568 = vmatprep.subr.bf16.mxu0 0
  %569 = vmatpush1.bf16.msra.mxu0 0
  %570 = vmatprep.subr.bf16.mxu0 0
  %571 = vmatpush1.bf16.msra.mxu0 0
  %572 = vmatprep.subr.bf16.mxu0 0
  %573 = vmatpush1.bf16.msra.mxu0 0
  %574 = vmatprep.subr.bf16.mxu0 0
  %575 = vmatpush1.bf16.msra.mxu0 0
  %576 = vmatprep.subr.bf16.mxu0 0
  %577 = vmatpush1.bf16.msra.mxu0 0
  %578 = vmatprep.subr.bf16.mxu0 0
  %579 = vmatpush1.bf16.msra.mxu0 0
  %580 = vmatprep.subr.bf16.mxu0 0
  %581 = vmatpush1.bf16.msra.mxu0 0
  %582 = vmatprep.subr.bf16.mxu0 0
  %583 = vmatpush1.bf16.msra.mxu0 0
  %584 = vmatprep.subr.bf16.mxu0 0
  %585 = vmatpush1.bf16.msra.mxu0 0
  %586 = vmatprep.subr.bf16.mxu0 0
  %587 = vmatpush1.bf16.msra.mxu0 0
  %588 = vmatprep.subr.bf16.mxu0 0
  %589 = vmatpush1.bf16.msra.mxu0 0
  %590 = vmatprep.subr.bf16.mxu0 0
  %591 = vmatpush1.bf16.msra.mxu0 0
  %592 = vmatprep.subr.bf16.mxu0 0
  %593 = vmatpush1.bf16.msra.mxu0 0
  %594 = vmatprep.mubr.bf16.mxu0 0
  %595 = vmatmul.mubr.bf16.gmra.mrb[0].mxu0 %v557
  %v596 = vpop.f32.mrb[0].mxu0
  %v597 = vadd.f32 0.0, %v596
  %v598 = vpop.f32.mrb[0].mxu0
  %v599 = vpop.f32.mrb[0].mxu0
  %v600 = vadd.f32 0.0, %v599
  %v601 = vpop.f32.mrb[0].mxu0
  %602 = vmatprep.mubr.bf16.mxu0 0
  %603 = vmatmul.mubr.bf16.gmra.mrb[0].mxu0 %v560
  %v604 = vpop.f32.mrb[0].mxu0
  %v605 = vadd.f32 0.0, %v604
  %v606 = vpop.f32.mrb[0].mxu0
  %v607 = vpop.f32.mrb[0].mxu0
  %v608 = vadd.f32 0.0, %v607
  %v609 = vpop.f32.mrb[0].mxu0
  %610 = vdwg.mxu0
  %vm611 = vcmp.gt.f32.partialorder %v597, 0.0
  %vm612 = vcmp.gt.f32.partialorder %v600, 0.0
  %vm613 = vcmp.gt.f32.partialorder %v605, 0.0
  %vm614 = vcmp.gt.f32.partialorder %v608, 0.0
  %v615 = vmul.f32 %v597, 1.442695
  %v616 = vpow.pop %v615
  %v617 = vmul.f32 %v600, 1.442695
  %v618 = vpow.pop %v617
  %v619 = vmul.f32 %v605, 1.442695
  %v620 = vpow.pop %v619
  %v621 = vmul.f32 %v608, 1.442695
  %v622 = vpow.pop %v621
  %v623 = vsub.f32 %v616, 1.0
  %v624 = vsub.f32 %v618, 1.0
  %v625 = vsub.f32 %v620, 1.0
  %v626 = vsub.f32 %v622, 1.0
  %v627 = vsel %vm611, %v597, %v623
  %v628 = vsel %vm612, %v600, %v624
  %v629 = vsel %vm613, %v605, %v625
  %v630 = vsel %vm614, %v608, %v626
  %v631 = vpack.c.bf16 %v628, %v627
  %v632 = vpack.c.bf16 %v630, %v629
  %v633 = vpack.c.bf16 %v275, %v275
  %vm634 = vcmask 64512
  %v636 = vsel %vm634, %v631, 0
  %v639 = vsel %vm634, %v632, 0
  %vm641 = vcmask 1043456
  %v643 = vsel %vm641, %v633, 0
  %645 = vmatprep.subr.bf16.mxu0 0
  %646 = vmatpush1.bf16.msra.mxu0 %v643
  %647 = vmatprep.subr.bf16.mxu0 0
  %648 = vmatpush1.bf16.msra.mxu0 0
  %649 = vmatprep.subr.bf16.mxu0 0
  %650 = vmatpush1.bf16.msra.mxu0 0
  %651 = vmatprep.subr.bf16.mxu0 0
  %652 = vmatpush1.bf16.msra.mxu0 0
  %653 = vmatprep.subr.bf16.mxu0 0
  %654 = vmatpush1.bf16.msra.mxu0 0
  %655 = vmatprep.subr.bf16.mxu0 0
  %656 = vmatpush1.bf16.msra.mxu0 0
  %657 = vmatprep.subr.bf16.mxu0 0
  %658 = vmatpush1.bf16.msra.mxu0 0
  %659 = vmatprep.subr.bf16.mxu0 0
  %660 = vmatpush1.bf16.msra.mxu0 0
  %661 = vmatprep.subr.bf16.mxu0 0
  %662 = vmatpush1.bf16.msra.mxu0 0
  %663 = vmatprep.subr.bf16.mxu0 0
  %664 = vmatpush1.bf16.msra.mxu0 0
  %665 = vmatprep.subr.bf16.mxu0 0
  %666 = vmatpush1.bf16.msra.mxu0 0
  %667 = vmatprep.subr.bf16.mxu0 0
  %668 = vmatpush1.bf16.msra.mxu0 0
  %669 = vmatprep.subr.bf16.mxu0 0
  %670 = vmatpush1.bf16.msra.mxu0 0
  %671 = vmatprep.subr.bf16.mxu0 0
  %672 = vmatpush1.bf16.msra.mxu0 0
  %673 = vmatprep.subr.bf16.mxu0 0
  %674 = vmatpush1.bf16.msra.mxu0 0
  %675 = vmatprep.subr.bf16.mxu0 0
  %676 = vmatpush1.bf16.msra.mxu0 0
  %677 = vmatprep.mubr.bf16.mxu0 0
  %678 = vmatmul.mubr.bf16.gmra.mrb[0].mxu0 %v636
  %v679 = vpop.f32.mrb[0].mxu0
  %v680 = vadd.f32 0.0, %v679
  %v681 = vpop.f32.mrb[0].mxu0
  %v682 = vpop.f32.mrb[0].mxu0
  %v683 = vadd.f32 0.0, %v682
  %v684 = vpop.f32.mrb[0].mxu0
  %685 = vmatprep.mubr.bf16.mxu0 0
  %686 = vmatmul.mubr.bf16.gmra.mrb[0].mxu0 %v639
  %v687 = vpop.f32.mrb[0].mxu0
  %v688 = vadd.f32 0.0, %v687
  %v689 = vpop.f32.mrb[0].mxu0
  %v690 = vpop.f32.mrb[0].mxu0
  %v691 = vadd.f32 0.0, %v690
  %v692 = vpop.f32.mrb[0].mxu0
  %693 = vdwg.mxu0
  %v695 = vsel %vm634, %v451, 0
  %v698 = vsel %vm634, %v452, 0
  %v701 = vsel %vm641, %v453, 0
  %703 = vmatprep.subr.bf16.mxu0 0
  %704 = vmatpush1.bf16.msra.mxu0 %v701
  %705 = vmatprep.subr.bf16.mxu0 0
  %706 = vmatpush1.bf16.msra.mxu0 0
  %707 = vmatprep.subr.bf16.mxu0 0
  %708 = vmatpush1.bf16.msra.mxu0 0
  %709 = vmatprep.subr.bf16.mxu0 0
  %710 = vmatpush1.bf16.msra.mxu0 0
  %711 = vmatprep.subr.bf16.mxu0 0
  %712 = vmatpush1.bf16.msra.mxu0 0
  %713 = vmatprep.subr.bf16.mxu0 0
  %714 = vmatpush1.bf16.msra.mxu0 0
  %715 = vmatprep.subr.bf16.mxu0 0
  %716 = vmatpush1.bf16.msra.mxu0 0
  %717 = vmatprep.subr.bf16.mxu0 0
  %718 = vmatpush1.bf16.msra.mxu0 0
  %719 = vmatprep.subr.bf16.mxu0 0
  %720 = vmatpush1.bf16.msra.mxu0 0
  %721 = vmatprep.subr.bf16.mxu0 0
  %722 = vmatpush1.bf16.msra.mxu0 0
  %723 = vmatprep.subr.bf16.mxu0 0
  %724 = vmatpush1.bf16.msra.mxu0 0
  %725 = vmatprep.subr.bf16.mxu0 0
  %726 = vmatpush1.bf16.msra.mxu0 0
  %727 = vmatprep.subr.bf16.mxu0 0
  %728 = vmatpush1.bf16.msra.mxu0 0
  %729 = vmatprep.subr.bf16.mxu0 0
  %730 = vmatpush1.bf16.msra.mxu0 0
  %731 = vmatprep.subr.bf16.mxu0 0
  %732 = vmatpush1.bf16.msra.mxu0 0
  %733 = vmatprep.subr.bf16.mxu0 0
  %734 = vmatpush1.bf16.msra.mxu0 0
  %735 = vmatprep.mubr.bf16.mxu0 0
  %736 = vmatmul.mubr.bf16.gmra.mrb[0].mxu0 %v695
  %v737 = vpop.f32.mrb[0].mxu0
  %v738 = vadd.f32 %v680, %v737
  %v739 = vpop.f32.mrb[0].mxu0
  %v740 = vpop.f32.mrb[0].mxu0
  %v741 = vadd.f32 %v683, %v740
  %v742 = vpop.f32.mrb[0].mxu0
  %743 = vmatprep.mubr.bf16.mxu0 0
  %744 = vmatmul.mubr.bf16.gmra.mrb[0].mxu0 %v698
  %v745 = vpop.f32.mrb[0].mxu0
  %v746 = vadd.f32 %v688, %v745
  %v747 = vpop.f32.mrb[0].mxu0
  %v748 = vpop.f32.mrb[0].mxu0
  %v749 = vadd.f32 %v691, %v748
  %v750 = vpop.f32.mrb[0].mxu0
  %751 = vdwg.mxu0
  %752 = vset.pattern.permute.xlu0 2
  %753 = vperm.xlu0 %752, %v180
  %v754 = vpop.permute.xlu0 %753
  %756 = vset.pattern.permute.xlu0 2
  %757 = vperm.xlu0 %756, %v185
  %v758 = vpop.permute.xlu0 %757
  %760 = vset.pattern.permute.xlu0 2
  %761 = vperm.xlu0 %760, %v190
  %v762 = vpop.permute.xlu0 %761
  %764 = vset.pattern.permute.xlu0 2
  %765 = vperm.xlu0 %764, %v195
  %v766 = vpop.permute.xlu0 %765
  %v768 = vlaneseq
  %v769 = vshrl.u32 %v768, 7
  %v770 = vsub.s32 2, %v769
  %v771 = vrot.slane %v269, %v770
  %v772 = vadd.f32 %v754, %v771
  %v773 = vadd.f32 %v758, %v771
  %v774 = vadd.f32 %v762, %v771
  %v775 = vadd.f32 %v766, %v771
  %v776 = vmul.f32 %v772, 0.2
  %v777 = vmul.f32 %v773, 0.2
  %v778 = vmul.f32 %v774, 0.2
  %v779 = vmul.f32 %v775, 0.2
  %v780 = vmax.f32 %v772, %v776
  %v781 = vmax.f32 %v773, %v777
  %v782 = vmax.f32 %v774, %v778
  %v783 = vmax.f32 %v775, %v779
  %v784 = vadd.f32 %v780, %v27
  %v785 = vadd.f32 %v781, %v28
  %v786 = vadd.f32 %v782, %v29
  %v787 = vadd.f32 %v783, %v30
  %v788 = vsel %vm100, %v784, -inf
  %789 = vmax.xlane.f32.xlu0 %v788
  %v790 = vpop.xlane.xlu0 %789
  %v791 = vsel %vm100, %v785, -inf
  %792 = vmax.xlane.f32.xlu0 %v791
  %v793 = vpop.xlane.xlu0 %792
  %v794 = vsel %vm100, %v786, -inf
  %795 = vmax.xlane.f32.xlu0 %v794
  %v796 = vpop.xlane.xlu0 %795
  %v797 = vsel %vm100, %v787, -inf
  %798 = vmax.xlane.f32.xlu0 %v797
  %v799 = vpop.xlane.xlu0 %798
  %v800 = vsub.f32 %v784, %v790
  %v801 = vsub.f32 %v785, %v793
  %v802 = vsub.f32 %v786, %v796
  %v803 = vsub.f32 %v787, %v799
  %v804 = vmul.f32 %v800, 1.442695
  %v805 = vpow.pop %v804
  %v806 = vmul.f32 %v801, 1.442695
  %v807 = vpow.pop %v806
  %v808 = vmul.f32 %v802, 1.442695
  %v809 = vpow.pop %v808
  %v810 = vmul.f32 %v803, 1.442695
  %v811 = vpow.pop %v810
  %v812 = vsel %vm100, %v805, 0.0
  %813 = vadd.xlane.f32.xlu0 %v812
  %v814 = vpop.xlane.xlu0 %813
  %v815 = vsel %vm100, %v807, 0.0
  %816 = vadd.xlane.f32.xlu0 %v815
  %v817 = vpop.xlane.xlu0 %816
  %v818 = vsel %vm100, %v809, 0.0
  %819 = vadd.xlane.f32.xlu0 %v818
  %v820 = vpop.xlane.xlu0 %819
  %v821 = vsel %vm100, %v811, 0.0
  %822 = vadd.xlane.f32.xlu0 %v821
  %v823 = vpop.xlane.xlu0 %822
  %v824 = vrcp.pop %v814
  %v825 = vrcp.pop %v817
  %v826 = vrcp.pop %v820
  %v827 = vrcp.pop %v823
  %v828 = vmul.f32 %v814, %v824
  %v829 = vmul.f32 %v817, %v825
  %v830 = vmul.f32 %v820, %v826
  %v831 = vmul.f32 %v823, %v827
  %v832 = vsub.f32 2.0, %v828
  %v833 = vsub.f32 2.0, %v829
  %v834 = vsub.f32 2.0, %v830
  %v835 = vsub.f32 2.0, %v831
  %v836 = vmul.f32 %v824, %v832
  %v837 = vmul.f32 %v825, %v833
  %v838 = vmul.f32 %v826, %v834
  %v839 = vmul.f32 %v827, %v835
  %v840 = vmul.f32 %v805, %v836
  %v841 = vmul.f32 %v807, %v837
  %v842 = vmul.f32 %v809, %v838
  %v843 = vmul.f32 %v811, %v839
  %v844 = vpack.c.bf16 %v841, %v840
  %v845 = vpack.c.bf16 %v843, %v842
  %846 = vrot.lane.b32.xlu0 %v272, 112
  %v847 = vpop.permute.xlu0 %846
  %848 = vrot.lane.b32.xlu0 %v273, 112
  %v849 = vpop.permute.xlu0 %848
  %v853 = vsel %vm100, %v844, 0
  %v856 = vsel %vm100, %v845, 0
  %858 = vmatprep.subr.bf16.mxu0 0
  %859 = vmatpush1.bf16.msra.mxu0 %v847
  %860 = vmatprep.subr.bf16.mxu0 0
  %861 = vmatpush1.bf16.msra.mxu0 %v849
  %862 = vmatprep.subr.bf16.mxu0 0
  %863 = vmatpush1.bf16.msra.mxu0 0
  %864 = vmatprep.subr.bf16.mxu0 0
  %865 = vmatpush1.bf16.msra.mxu0 0
  %866 = vmatprep.subr.bf16.mxu0 0
  %867 = vmatpush1.bf16.msra.mxu0 0
  %868 = vmatprep.subr.bf16.mxu0 0
  %869 = vmatpush1.bf16.msra.mxu0 0
  %870 = vmatprep.subr.bf16.mxu0 0
  %871 = vmatpush1.bf16.msra.mxu0 0
  %872 = vmatprep.subr.bf16.mxu0 0
  %873 = vmatpush1.bf16.msra.mxu0 0
  %874 = vmatprep.subr.bf16.mxu0 0
  %875 = vmatpush1.bf16.msra.mxu0 0
  %876 = vmatprep.subr.bf16.mxu0 0
  %877 = vmatpush1.bf16.msra.mxu0 0
  %878 = vmatprep.subr.bf16.mxu0 0
  %879 = vmatpush1.bf16.msra.mxu0 0
  %880 = vmatprep.subr.bf16.mxu0 0
  %881 = vmatpush1.bf16.msra.mxu0 0
  %882 = vmatprep.subr.bf16.mxu0 0
  %883 = vmatpush1.bf16.msra.mxu0 0
  %884 = vmatprep.subr.bf16.mxu0 0
  %885 = vmatpush1.bf16.msra.mxu0 0
  %886 = vmatprep.subr.bf16.mxu0 0
  %887 = vmatpush1.bf16.msra.mxu0 0
  %888 = vmatprep.subr.bf16.mxu0 0
  %889 = vmatpush1.bf16.msra.mxu0 0
  %890 = vmatprep.mubr.bf16.mxu0 0
  %891 = vmatmul.mubr.bf16.gmra.mrb[0].mxu0 %v853
  %v892 = vpop.f32.mrb[0].mxu0
  %v893 = vadd.f32 0.0, %v892
  %v894 = vpop.f32.mrb[0].mxu0
  %v895 = vpop.f32.mrb[0].mxu0
  %v896 = vadd.f32 0.0, %v895
  %v897 = vpop.f32.mrb[0].mxu0
  %898 = vmatprep.mubr.bf16.mxu0 0
  %899 = vmatmul.mubr.bf16.gmra.mrb[0].mxu0 %v856
  %v900 = vpop.f32.mrb[0].mxu0
  %v901 = vadd.f32 0.0, %v900
  %v902 = vpop.f32.mrb[0].mxu0
  %v903 = vpop.f32.mrb[0].mxu0
  %v904 = vadd.f32 0.0, %v903
  %v905 = vpop.f32.mrb[0].mxu0
  %906 = vdwg.mxu0
  %vm907 = vcmp.gt.f32.partialorder %v893, 0.0
  %vm908 = vcmp.gt.f32.partialorder %v896, 0.0
  %vm909 = vcmp.gt.f32.partialorder %v901, 0.0
  %vm910 = vcmp.gt.f32.partialorder %v904, 0.0
  %v911 = vmul.f32 %v893, 1.442695
  %v912 = vpow.pop %v911
  %v913 = vmul.f32 %v896, 1.442695
  %v914 = vpow.pop %v913
  %v915 = vmul.f32 %v901, 1.442695
  %v916 = vpow.pop %v915
  %v917 = vmul.f32 %v904, 1.442695
  %v918 = vpow.pop %v917
  %v919 = vsub.f32 %v912, 1.0
  %v920 = vsub.f32 %v914, 1.0
  %v921 = vsub.f32 %v916, 1.0
  %v922 = vsub.f32 %v918, 1.0
  %v923 = vsel %vm907, %v893, %v919
  %v924 = vsel %vm908, %v896, %v920
  %v925 = vsel %vm909, %v901, %v921
  %v926 = vsel %vm910, %v904, %v922
  %v927 = vpack.c.bf16 %v924, %v923
  %v928 = vpack.c.bf16 %v926, %v925
  %v929 = vpack.c.bf16 %v276, %v276
  %v931 = vsel %vm634, %v927, 0
  %v934 = vsel %vm634, %v928, 0
  %v937 = vsel %vm641, %v929, 0
  %939 = vmatprep.subr.bf16.mxu0 0
  %940 = vmatpush1.bf16.msra.mxu0 %v937
  %941 = vmatprep.subr.bf16.mxu0 0
  %942 = vmatpush1.bf16.msra.mxu0 0
  %943 = vmatprep.subr.bf16.mxu0 0
  %944 = vmatpush1.bf16.msra.mxu0 0
  %945 = vmatprep.subr.bf16.mxu0 0
  %946 = vmatpush1.bf16.msra.mxu0 0
  %947 = vmatprep.subr.bf16.mxu0 0
  %948 = vmatpush1.bf16.msra.mxu0 0
  %949 = vmatprep.subr.bf16.mxu0 0
  %950 = vmatpush1.bf16.msra.mxu0 0
  %951 = vmatprep.subr.bf16.mxu0 0
  %952 = vmatpush1.bf16.msra.mxu0 0
  %953 = vmatprep.subr.bf16.mxu0 0
  %954 = vmatpush1.bf16.msra.mxu0 0
  %955 = vmatprep.subr.bf16.mxu0 0
  %956 = vmatpush1.bf16.msra.mxu0 0
  %957 = vmatprep.subr.bf16.mxu0 0
  %958 = vmatpush1.bf16.msra.mxu0 0
  %959 = vmatprep.subr.bf16.mxu0 0
  %960 = vmatpush1.bf16.msra.mxu0 0
  %961 = vmatprep.subr.bf16.mxu0 0
  %962 = vmatpush1.bf16.msra.mxu0 0
  %963 = vmatprep.subr.bf16.mxu0 0
  %964 = vmatpush1.bf16.msra.mxu0 0
  %965 = vmatprep.subr.bf16.mxu0 0
  %966 = vmatpush1.bf16.msra.mxu0 0
  %967 = vmatprep.subr.bf16.mxu0 0
  %968 = vmatpush1.bf16.msra.mxu0 0
  %969 = vmatprep.subr.bf16.mxu0 0
  %970 = vmatpush1.bf16.msra.mxu0 0
  %971 = vmatprep.mubr.bf16.mxu0 0
  %972 = vmatmul.mubr.bf16.gmra.mrb[0].mxu0 %v931
  %v973 = vpop.f32.mrb[0].mxu0
  %v974 = vadd.f32 0.0, %v973
  %v975 = vpop.f32.mrb[0].mxu0
  %v976 = vpop.f32.mrb[0].mxu0
  %v977 = vadd.f32 0.0, %v976
  %v978 = vpop.f32.mrb[0].mxu0
  %979 = vmatprep.mubr.bf16.mxu0 0
  %980 = vmatmul.mubr.bf16.gmra.mrb[0].mxu0 %v934
  %v981 = vpop.f32.mrb[0].mxu0
  %v982 = vadd.f32 0.0, %v981
  %v983 = vpop.f32.mrb[0].mxu0
  %v984 = vpop.f32.mrb[0].mxu0
  %v985 = vadd.f32 0.0, %v984
  %v986 = vpop.f32.mrb[0].mxu0
  %987 = vdwg.mxu0
  %v988 = vadd.f32 %v738, %v974
  %v989 = vadd.f32 %v741, %v977
  %v990 = vadd.f32 %v746, %v982
  %v991 = vadd.f32 %v749, %v985
  %992 = vset.pattern.permute.xlu0 3
  %993 = vperm.xlu0 %992, %v180
  %v994 = vpop.permute.xlu0 %993
  %996 = vset.pattern.permute.xlu0 3
  %997 = vperm.xlu0 %996, %v185
  %v998 = vpop.permute.xlu0 %997
  %1000 = vset.pattern.permute.xlu0 3
  %1001 = vperm.xlu0 %1000, %v190
  %v1002 = vpop.permute.xlu0 %1001
  %1004 = vset.pattern.permute.xlu0 3
  %1005 = vperm.xlu0 %1004, %v195
  %v1006 = vpop.permute.xlu0 %1005
  %v1008 = vlaneseq
  %v1009 = vshrl.u32 %v1008, 7
  %v1010 = vsub.s32 3, %v1009
  %v1011 = vrot.slane %v269, %v1010
  %v1012 = vadd.f32 %v994, %v1011
  %v1013 = vadd.f32 %v998, %v1011
  %v1014 = vadd.f32 %v1002, %v1011
  %v1015 = vadd.f32 %v1006, %v1011
  %v1016 = vmul.f32 %v1012, 0.2
  %v1017 = vmul.f32 %v1013, 0.2
  %v1018 = vmul.f32 %v1014, 0.2
  %v1019 = vmul.f32 %v1015, 0.2
  %v1020 = vmax.f32 %v1012, %v1016
  %v1021 = vmax.f32 %v1013, %v1017
  %v1022 = vmax.f32 %v1014, %v1018
  %v1023 = vmax.f32 %v1015, %v1019
  %v1024 = vadd.f32 %v1020, %v27
  %v1025 = vadd.f32 %v1021, %v28
  %v1026 = vadd.f32 %v1022, %v29
  %v1027 = vadd.f32 %v1023, %v30
  %v1028 = vsel %vm100, %v1024, -inf
  %1029 = vmax.xlane.f32.xlu0 %v1028
  %v1030 = vpop.xlane.xlu0 %1029
  %v1031 = vsel %vm100, %v1025, -inf
  %1032 = vmax.xlane.f32.xlu0 %v1031
  %v1033 = vpop.xlane.xlu0 %1032
  %v1034 = vsel %vm100, %v1026, -inf
  %1035 = vmax.xlane.f32.xlu0 %v1034
  %v1036 = vpop.xlane.xlu0 %1035
  %v1037 = vsel %vm100, %v1027, -inf
  %1038 = vmax.xlane.f32.xlu0 %v1037
  %v1039 = vpop.xlane.xlu0 %1038
  %v1040 = vsub.f32 %v1024, %v1030
  %v1041 = vsub.f32 %v1025, %v1033
  %v1042 = vsub.f32 %v1026, %v1036
  %v1043 = vsub.f32 %v1027, %v1039
  %v1044 = vmul.f32 %v1040, 1.442695
  %v1045 = vpow.pop %v1044
  %v1046 = vmul.f32 %v1041, 1.442695
  %v1047 = vpow.pop %v1046
  %v1048 = vmul.f32 %v1042, 1.442695
  %v1049 = vpow.pop %v1048
  %v1050 = vmul.f32 %v1043, 1.442695
  %v1051 = vpow.pop %v1050
  %v1052 = vsel %vm100, %v1045, 0.0
  %1053 = vadd.xlane.f32.xlu0 %v1052
  %v1054 = vpop.xlane.xlu0 %1053
  %v1055 = vsel %vm100, %v1047, 0.0
  %1056 = vadd.xlane.f32.xlu0 %v1055
  %v1057 = vpop.xlane.xlu0 %1056
  %v1058 = vsel %vm100, %v1049, 0.0
  %1059 = vadd.xlane.f32.xlu0 %v1058
  %v1060 = vpop.xlane.xlu0 %1059
  %v1061 = vsel %vm100, %v1051, 0.0
  %1062 = vadd.xlane.f32.xlu0 %v1061
  %v1063 = vpop.xlane.xlu0 %1062
  %v1064 = vrcp.pop %v1054
  %v1065 = vrcp.pop %v1057
  %v1066 = vrcp.pop %v1060
  %v1067 = vrcp.pop %v1063
  %v1068 = vmul.f32 %v1054, %v1064
  %v1069 = vmul.f32 %v1057, %v1065
  %v1070 = vmul.f32 %v1060, %v1066
  %v1071 = vmul.f32 %v1063, %v1067
  %v1072 = vsub.f32 2.0, %v1068
  %v1073 = vsub.f32 2.0, %v1069
  %v1074 = vsub.f32 2.0, %v1070
  %v1075 = vsub.f32 2.0, %v1071
  %v1076 = vmul.f32 %v1064, %v1072
  %v1077 = vmul.f32 %v1065, %v1073
  %v1078 = vmul.f32 %v1066, %v1074
  %v1079 = vmul.f32 %v1067, %v1075
  %v1080 = vmul.f32 %v1045, %v1076
  %v1081 = vmul.f32 %v1047, %v1077
  %v1082 = vmul.f32 %v1049, %v1078
  %v1083 = vmul.f32 %v1051, %v1079
  %v1084 = vpack.c.bf16 %v1081, %v1080
  %v1085 = vpack.c.bf16 %v1083, %v1082
  %1086 = vrot.lane.b32.xlu0 %v272, 104
  %v1087 = vpop.permute.xlu0 %1086
  %1088 = vrot.lane.b32.xlu0 %v273, 104
  %v1089 = vpop.permute.xlu0 %1088
  %v1093 = vsel %vm100, %v1084, 0
  %v1096 = vsel %vm100, %v1085, 0
  %1098 = vmatprep.subr.bf16.mxu0 0
  %1099 = vmatpush1.bf16.msra.mxu0 %v1087
  %1100 = vmatprep.subr.bf16.mxu0 0
  %1101 = vmatpush1.bf16.msra.mxu0 %v1089
  %1102 = vmatprep.subr.bf16.mxu0 0
  %1103 = vmatpush1.bf16.msra.mxu0 0
  %1104 = vmatprep.subr.bf16.mxu0 0
  %1105 = vmatpush1.bf16.msra.mxu0 0
  %1106 = vmatprep.subr.bf16.mxu0 0
  %1107 = vmatpush1.bf16.msra.mxu0 0
  %1108 = vmatprep.subr.bf16.mxu0 0
  %1109 = vmatpush1.bf16.msra.mxu0 0
  %1110 = vmatprep.subr.bf16.mxu0 0
  %1111 = vmatpush1.bf16.msra.mxu0 0
  %1112 = vmatprep.subr.bf16.mxu0 0
  %1113 = vmatpush1.bf16.msra.mxu0 0
  %1114 = vmatprep.subr.bf16.mxu0 0
  %1115 = vmatpush1.bf16.msra.mxu0 0
  %1116 = vmatprep.subr.bf16.mxu0 0
  %1117 = vmatpush1.bf16.msra.mxu0 0
  %1118 = vmatprep.subr.bf16.mxu0 0
  %1119 = vmatpush1.bf16.msra.mxu0 0
  %1120 = vmatprep.subr.bf16.mxu0 0
  %1121 = vmatpush1.bf16.msra.mxu0 0
  %1122 = vmatprep.subr.bf16.mxu0 0
  %1123 = vmatpush1.bf16.msra.mxu0 0
  %1124 = vmatprep.subr.bf16.mxu0 0
  %1125 = vmatpush1.bf16.msra.mxu0 0
  %1126 = vmatprep.subr.bf16.mxu0 0
  %1127 = vmatpush1.bf16.msra.mxu0 0
  %1128 = vmatprep.subr.bf16.mxu0 0
  %1129 = vmatpush1.bf16.msra.mxu0 0
  %1130 = vmatprep.mubr.bf16.mxu0 0
  %1131 = vmatmul.mubr.bf16.gmra.mrb[0].mxu0 %v1093
  %v1132 = vpop.f32.mrb[0].mxu0
  %v1133 = vadd.f32 0.0, %v1132
  %v1134 = vpop.f32.mrb[0].mxu0
  %v1135 = vpop.f32.mrb[0].mxu0
  %v1136 = vadd.f32 0.0, %v1135
  %v1137 = vpop.f32.mrb[0].mxu0
  %1138 = vmatprep.mubr.bf16.mxu0 0
  %1139 = vmatmul.mubr.bf16.gmra.mrb[0].mxu0 %v1096
  %v1140 = vpop.f32.mrb[0].mxu0
  %v1141 = vadd.f32 0.0, %v1140
  %v1142 = vpop.f32.mrb[0].mxu0
  %v1143 = vpop.f32.mrb[0].mxu0
  %v1144 = vadd.f32 0.0, %v1143
  %v1145 = vpop.f32.mrb[0].mxu0
  %1146 = vdwg.mxu0
  %vm1147 = vcmp.gt.f32.partialorder %v1133, 0.0
  %vm1148 = vcmp.gt.f32.partialorder %v1136, 0.0
  %vm1149 = vcmp.gt.f32.partialorder %v1141, 0.0
  %vm1150 = vcmp.gt.f32.partialorder %v1144, 0.0
  %v1151 = vmul.f32 %v1133, 1.442695
  %v1152 = vpow.pop %v1151
  %v1153 = vmul.f32 %v1136, 1.442695
  %v1154 = vpow.pop %v1153
  %v1155 = vmul.f32 %v1141, 1.442695
  %v1156 = vpow.pop %v1155
  %v1157 = vmul.f32 %v1144, 1.442695
  %v1158 = vpow.pop %v1157
  %v1159 = vsub.f32 %v1152, 1.0
  %v1160 = vsub.f32 %v1154, 1.0
  %v1161 = vsub.f32 %v1156, 1.0
  %v1162 = vsub.f32 %v1158, 1.0
  %v1163 = vsel %vm1147, %v1133, %v1159
  %v1164 = vsel %vm1148, %v1136, %v1160
  %v1165 = vsel %vm1149, %v1141, %v1161
  %v1166 = vsel %vm1150, %v1144, %v1162
  %v1167 = vpack.c.bf16 %v1164, %v1163
  %v1168 = vpack.c.bf16 %v1166, %v1165
  %v1169 = vpack.c.bf16 %v277, %v277
  %v1171 = vsel %vm634, %v1167, 0
  %v1174 = vsel %vm634, %v1168, 0
  %v1177 = vsel %vm641, %v1169, 0
  %1179 = vmatprep.subr.bf16.mxu0 0
  %1180 = vmatpush1.bf16.msra.mxu0 %v1177
  %1181 = vmatprep.subr.bf16.mxu0 0
  %1182 = vmatpush1.bf16.msra.mxu0 0
  %1183 = vmatprep.subr.bf16.mxu0 0
  %1184 = vmatpush1.bf16.msra.mxu0 0
  %1185 = vmatprep.subr.bf16.mxu0 0
  %1186 = vmatpush1.bf16.msra.mxu0 0
  %1187 = vmatprep.subr.bf16.mxu0 0
  %1188 = vmatpush1.bf16.msra.mxu0 0
  %1189 = vmatprep.subr.bf16.mxu0 0
  %1190 = vmatpush1.bf16.msra.mxu0 0
  %1191 = vmatprep.subr.bf16.mxu0 0
  %1192 = vmatpush1.bf16.msra.mxu0 0
  %1193 = vmatprep.subr.bf16.mxu0 0
  %1194 = vmatpush1.bf16.msra.mxu0 0
  %1195 = vmatprep.subr.bf16.mxu0 0
  %1196 = vmatpush1.bf16.msra.mxu0 0
  %1197 = vmatprep.subr.bf16.mxu0 0
  %1198 = vmatpush1.bf16.msra.mxu0 0
  %1199 = vmatprep.subr.bf16.mxu0 0
  %1200 = vmatpush1.bf16.msra.mxu0 0
  %1201 = vmatprep.subr.bf16.mxu0 0
  %1202 = vmatpush1.bf16.msra.mxu0 0
  %1203 = vmatprep.subr.bf16.mxu0 0
  %1204 = vmatpush1.bf16.msra.mxu0 0
  %1205 = vmatprep.subr.bf16.mxu0 0
  %1206 = vmatpush1.bf16.msra.mxu0 0
  %1207 = vmatprep.subr.bf16.mxu0 0
  %1208 = vmatpush1.bf16.msra.mxu0 0
  %1209 = vmatprep.subr.bf16.mxu0 0
  %1210 = vmatpush1.bf16.msra.mxu0 0
  %1211 = vmatprep.mubr.bf16.mxu0 0
  %1212 = vmatmul.mubr.bf16.gmra.mrb[0].mxu0 %v1171
  %v1213 = vpop.f32.mrb[0].mxu0
  %v1214 = vadd.f32 0.0, %v1213
  %v1215 = vpop.f32.mrb[0].mxu0
  %v1216 = vpop.f32.mrb[0].mxu0
  %v1217 = vadd.f32 0.0, %v1216
  %v1218 = vpop.f32.mrb[0].mxu0
  %1219 = vmatprep.mubr.bf16.mxu0 0
  %1220 = vmatmul.mubr.bf16.gmra.mrb[0].mxu0 %v1174
  %v1221 = vpop.f32.mrb[0].mxu0
  %v1222 = vadd.f32 0.0, %v1221
  %v1223 = vpop.f32.mrb[0].mxu0
  %v1224 = vpop.f32.mrb[0].mxu0
  %v1225 = vadd.f32 0.0, %v1224
  %v1226 = vpop.f32.mrb[0].mxu0
  %1227 = vdwg.mxu0
  %v1228 = vadd.f32 %v988, %v1214
  %v1229 = vadd.f32 %v989, %v1217
  %v1230 = vadd.f32 %v990, %v1222
  %v1231 = vadd.f32 %v991, %v1225
  %v1232 = vld [vmem:[%s6] sm:$0x3]
  %v1233 = vlaneseq
  %v1234 = vshrl.u32 %v1233, 7
  %v1235 = vsub.s32 0, %v1234
  %v1236 = vrot.slane %v1232, %v1235
  %v1237 = vmul.f32 %v1228, %v1236
  %v1238 = vmul.f32 %v1229, %v1236
  %v1239 = vmul.f32 %v1230, %v1236
  %v1240 = vmul.f32 %v1231, %v1236
  %vm1241 = vcmask 31744
  %v1242 = vsel %vm1241, %v1237, 0.0
  %1243 = vadd.xlane.f32.xlu0 %v1242
  %v1244 = vpop.xlane.xlu0 %1243
  %v1245 = vsel %vm1241, %v1238, 0.0
  %1246 = vadd.xlane.f32.xlu0 %v1245
  %v1247 = vpop.xlane.xlu0 %1246
  %v1248 = vsel %vm1241, %v1239, 0.0
  %1249 = vadd.xlane.f32.xlu0 %v1248
  %v1250 = vpop.xlane.xlu0 %1249
  %v1251 = vsel %vm1241, %v1240, 0.0
  %1252 = vadd.xlane.f32.xlu0 %v1251
  %v1253 = vpop.xlane.xlu0 %1252
  %v1255 = vrot.slane %v1232, 1
  %v1256 = vsel %vm1241, %v1255, 0
  %v1259 = vsel %vm1241, %v1228, 0
  %v1262 = vsel %vm1241, %v1229, 0
  %v1265 = vsel %vm1241, %v1230, 0
  %v1268 = vsel %vm1241, %v1231, 0
  %1270 = vmatprep.subr.mxu0 0.0
  %1271 = vmatpush1.xpose.msra.mxu0 %v1259
  %1272 = vmatprep.subr.mxu0 0.0
  %1273 = vmatpush1.xpose.msra.mxu0 %v1262
  %1274 = vmatprep.subr.mxu0 0.0
  %1275 = vmatpush1.xpose.msra.mxu0 %v1265
  %1276 = vmatprep.subr.mxu0 0.0
  %1277 = vmatpush1.xpose.msra.mxu0 %v1268
  %1278 = vmatprep.subr.mxu0 0.0
  %1279 = vmatpush1.xpose.msra.mxu0 0.0
  %1280 = vmatprep.subr.mxu0 0.0
  %1281 = vmatpush1.xpose.msra.mxu0 0.0
  %1282 = vmatprep.subr.mxu0 0.0
  %1283 = vmatpush1.xpose.msra.mxu0 0.0
  %1284 = vmatprep.subr.mxu0 0.0
  %1285 = vmatpush1.xpose.msra.mxu0 0.0
  %1286 = vmatprep.subr.mxu0 0.0
  %1287 = vmatpush1.xpose.msra.mxu0 0.0
  %1288 = vmatprep.subr.mxu0 0.0
  %1289 = vmatpush1.xpose.msra.mxu0 0.0
  %1290 = vmatprep.subr.mxu0 0.0
  %1291 = vmatpush1.xpose.msra.mxu0 0.0
  %1292 = vmatprep.subr.mxu0 0.0
  %1293 = vmatpush1.xpose.msra.mxu0 0.0
  %1294 = vmatprep.subr.mxu0 0.0
  %1295 = vmatpush1.xpose.msra.mxu0 0.0
  %1296 = vmatprep.subr.mxu0 0.0
  %1297 = vmatpush1.xpose.msra.mxu0 0.0
  %1298 = vmatprep.subr.mxu0 0.0
  %1299 = vmatpush1.xpose.msra.mxu0 0.0
  %1300 = vmatprep.subr.mxu0 0.0
  %1301 = vmatpush1.xpose.msra.mxu0 0.0
  %1302 = vmatprep.subr.mxu0 0.0
  %1303 = vmatpush1.xpose.msra.mxu0 0.0
  %1304 = vmatprep.subr.mxu0 0.0
  %1305 = vmatpush1.xpose.msra.mxu0 0.0
  %1306 = vmatprep.subr.mxu0 0.0
  %1307 = vmatpush1.xpose.msra.mxu0 0.0
  %1308 = vmatprep.subr.mxu0 0.0
  %1309 = vmatpush1.xpose.msra.mxu0 0.0
  %1310 = vmatprep.subr.mxu0 0.0
  %1311 = vmatpush1.xpose.msra.mxu0 0.0
  %1312 = vmatprep.subr.mxu0 0.0
  %1313 = vmatpush1.xpose.msra.mxu0 0.0
  %1314 = vmatprep.subr.mxu0 0.0
  %1315 = vmatpush1.xpose.msra.mxu0 0.0
  %1316 = vmatprep.subr.mxu0 0.0
  %1317 = vmatpush1.xpose.msra.mxu0 0.0
  %1318 = vmatprep.subr.mxu0 0.0
  %1319 = vmatpush1.xpose.msra.mxu0 0.0
  %1320 = vmatprep.subr.mxu0 0.0
  %1321 = vmatpush1.xpose.msra.mxu0 0.0
  %1322 = vmatprep.subr.mxu0 0.0
  %1323 = vmatpush1.xpose.msra.mxu0 0.0
  %1324 = vmatprep.subr.mxu0 0.0
  %1325 = vmatpush1.xpose.msra.mxu0 0.0
  %1326 = vmatprep.subr.mxu0 0.0
  %1327 = vmatpush1.xpose.msra.mxu0 0.0
  %1328 = vmatprep.subr.mxu0 0.0
  %1329 = vmatpush1.xpose.msra.mxu0 0.0
  %1330 = vmatprep.subr.mxu0 0.0
  %1331 = vmatpush1.xpose.msra.mxu0 0.0
  %1332 = vmatprep.subr.mxu0 0.0
  %1333 = vmatpush1.xpose.msra.mxu0 0.0
  %1334 = vmatprep.mubr.f32.mxu0 0.0
  %1335 = vmatmul.mubr.f32.gmra.mrb[0].mxu0 %v1256
  %v1336 = vpop.f32.mrb[0].mxu0
  %v1337 = vadd.f32 0.0, %v1336
  %v1338 = vpop.f32.mrb[0].mxu0
  %1339 = vdwg.mxu0
  %v1340 = vpack.c.bf16 %v1229, %v1228
  %v1341 = vpack.c.bf16 %v1231, %v1230
  %v1342 = vlaneseq
  %v1343 = vshrl.u32 %v1342, 7
  %v1344 = vsub.s32 0, %v1343
  %v1345 = vrot.slane %v1337, %v1344
  %v1346 = vadd.f32 %v1244, %v1345
  %v1347 = vadd.f32 %v1247, %v1345
  %v1348 = vadd.f32 %v1250, %v1345
  %v1349 = vadd.f32 %v1253, %v1345
  %v1350 = vmul.f32 %v1346, 0.2
  %v1351 = vmul.f32 %v1347, 0.2
  %v1352 = vmul.f32 %v1348, 0.2
  %v1353 = vmul.f32 %v1349, 0.2
  %v1354 = vmax.f32 %v1346, %v1350
  %v1355 = vmax.f32 %v1347, %v1351
  %v1356 = vmax.f32 %v1348, %v1352
  %v1357 = vmax.f32 %v1349, %v1353
  %v1358 = vadd.f32 %v1354, %v27
  %v1359 = vadd.f32 %v1355, %v28
  %v1360 = vadd.f32 %v1356, %v29
  %v1361 = vadd.f32 %v1357, %v30
  %v1362 = vsel %vm100, %v1358, -inf
  %1363 = vmax.xlane.f32.xlu0 %v1362
  %v1364 = vpop.xlane.xlu0 %1363
  %v1365 = vsel %vm100, %v1359, -inf
  %1366 = vmax.xlane.f32.xlu0 %v1365
  %v1367 = vpop.xlane.xlu0 %1366
  %v1368 = vsel %vm100, %v1360, -inf
  %1369 = vmax.xlane.f32.xlu0 %v1368
  %v1370 = vpop.xlane.xlu0 %1369
  %v1371 = vsel %vm100, %v1361, -inf
  %1372 = vmax.xlane.f32.xlu0 %v1371
  %v1373 = vpop.xlane.xlu0 %1372
  %v1374 = vsub.f32 %v1358, %v1364
  %v1375 = vsub.f32 %v1359, %v1367
  %v1376 = vsub.f32 %v1360, %v1370
  %v1377 = vsub.f32 %v1361, %v1373
  %v1378 = vmul.f32 %v1374, 1.442695
  %v1379 = vpow.pop %v1378
  %v1380 = vmul.f32 %v1375, 1.442695
  %v1381 = vpow.pop %v1380
  %v1382 = vmul.f32 %v1376, 1.442695
  %v1383 = vpow.pop %v1382
  %v1384 = vmul.f32 %v1377, 1.442695
  %v1385 = vpow.pop %v1384
  %v1386 = vsel %vm100, %v1379, 0.0
  %1387 = vadd.xlane.f32.xlu0 %v1386
  %v1388 = vpop.xlane.xlu0 %1387
  %v1389 = vsel %vm100, %v1381, 0.0
  %1390 = vadd.xlane.f32.xlu0 %v1389
  %v1391 = vpop.xlane.xlu0 %1390
  %v1392 = vsel %vm100, %v1383, 0.0
  %1393 = vadd.xlane.f32.xlu0 %v1392
  %v1394 = vpop.xlane.xlu0 %1393
  %v1395 = vsel %vm100, %v1385, 0.0
  %1396 = vadd.xlane.f32.xlu0 %v1395
  %v1397 = vpop.xlane.xlu0 %1396
  %v1398 = vrcp.pop %v1388
  %v1399 = vrcp.pop %v1391
  %v1400 = vrcp.pop %v1394
  %v1401 = vrcp.pop %v1397
  %v1402 = vmul.f32 %v1388, %v1398
  %v1403 = vmul.f32 %v1391, %v1399
  %v1404 = vmul.f32 %v1394, %v1400
  %v1405 = vmul.f32 %v1397, %v1401
  %v1406 = vsub.f32 2.0, %v1402
  %v1407 = vsub.f32 2.0, %v1403
  %v1408 = vsub.f32 2.0, %v1404
  %v1409 = vsub.f32 2.0, %v1405
  %v1410 = vmul.f32 %v1398, %v1406
  %v1411 = vmul.f32 %v1399, %v1407
  %v1412 = vmul.f32 %v1400, %v1408
  %v1413 = vmul.f32 %v1401, %v1409
  %v1414 = vmul.f32 %v1379, %v1410
  %v1415 = vmul.f32 %v1381, %v1411
  %v1416 = vmul.f32 %v1383, %v1412
  %v1417 = vmul.f32 %v1385, %v1413
  %v1418 = vpack.c.bf16 %v1415, %v1414
  %v1419 = vpack.c.bf16 %v1417, %v1416
  %v1421 = vsel %vm100, %v1418, 0
  %v1424 = vsel %vm100, %v1419, 0
  %1426 = vmatprep.subr.bf16.mxu0 0
  %1427 = vmatpush1.bf16.msra.mxu0 %v1340
  %1428 = vmatprep.subr.bf16.mxu0 0
  %1429 = vmatpush1.bf16.msra.mxu0 %v1341
  %1430 = vmatprep.subr.bf16.mxu0 0
  %1431 = vmatpush1.bf16.msra.mxu0 0
  %1432 = vmatprep.subr.bf16.mxu0 0
  %1433 = vmatpush1.bf16.msra.mxu0 0
  %1434 = vmatprep.subr.bf16.mxu0 0
  %1435 = vmatpush1.bf16.msra.mxu0 0
  %1436 = vmatprep.subr.bf16.mxu0 0
  %1437 = vmatpush1.bf16.msra.mxu0 0
  %1438 = vmatprep.subr.bf16.mxu0 0
  %1439 = vmatpush1.bf16.msra.mxu0 0
  %1440 = vmatprep.subr.bf16.mxu0 0
  %1441 = vmatpush1.bf16.msra.mxu0 0
  %1442 = vmatprep.subr.bf16.mxu0 0
  %1443 = vmatpush1.bf16.msra.mxu0 0
  %1444 = vmatprep.subr.bf16.mxu0 0
  %1445 = vmatpush1.bf16.msra.mxu0 0
  %1446 = vmatprep.subr.bf16.mxu0 0
  %1447 = vmatpush1.bf16.msra.mxu0 0
  %1448 = vmatprep.subr.bf16.mxu0 0
  %1449 = vmatpush1.bf16.msra.mxu0 0
  %1450 = vmatprep.subr.bf16.mxu0 0
  %1451 = vmatpush1.bf16.msra.mxu0 0
  %1452 = vmatprep.subr.bf16.mxu0 0
  %1453 = vmatpush1.bf16.msra.mxu0 0
  %1454 = vmatprep.subr.bf16.mxu0 0
  %1455 = vmatpush1.bf16.msra.mxu0 0
  %1456 = vmatprep.subr.bf16.mxu0 0
  %1457 = vmatpush1.bf16.msra.mxu0 0
  %1458 = vmatprep.mubr.bf16.mxu0 0
  %1459 = vmatmul.mubr.bf16.gmra.mrb[0].mxu0 %v1421
  %v1460 = vpop.f32.mrb[0].mxu0
  %v1461 = vadd.f32 0.0, %v1460
  %v1462 = vpop.f32.mrb[0].mxu0
  %v1463 = vpop.f32.mrb[0].mxu0
  %v1464 = vadd.f32 0.0, %v1463
  %v1465 = vpop.f32.mrb[0].mxu0
  %1466 = vmatprep.mubr.bf16.mxu0 0
  %1467 = vmatmul.mubr.bf16.gmra.mrb[0].mxu0 %v1424
  %v1468 = vpop.f32.mrb[0].mxu0
  %v1469 = vadd.f32 0.0, %v1468
  %v1470 = vpop.f32.mrb[0].mxu0
  %v1471 = vpop.f32.mrb[0].mxu0
  %v1472 = vadd.f32 0.0, %v1471
  %v1473 = vpop.f32.mrb[0].mxu0
  %1474 = vdwg.mxu0
  %vm1475 = vcmp.gt.f32.partialorder %v1461, 0.0
  %vm1476 = vcmp.gt.f32.partialorder %v1464, 0.0
  %vm1477 = vcmp.gt.f32.partialorder %v1469, 0.0
  %vm1478 = vcmp.gt.f32.partialorder %v1472, 0.0
  %v1479 = vmul.f32 %v1461, 1.442695
  %v1480 = vpow.pop %v1479
  %v1481 = vmul.f32 %v1464, 1.442695
  %v1482 = vpow.pop %v1481
  %v1483 = vmul.f32 %v1469, 1.442695
  %v1484 = vpow.pop %v1483
  %v1485 = vmul.f32 %v1472, 1.442695
  %v1486 = vpow.pop %v1485
  %v1487 = vsub.f32 %v1480, 1.0
  %v1488 = vsub.f32 %v1482, 1.0
  %v1489 = vsub.f32 %v1484, 1.0
  %v1490 = vsub.f32 %v1486, 1.0
  %v1491 = vsel %vm1475, %v1461, %v1487
  %v1492 = vsel %vm1476, %v1464, %v1488
  %v1493 = vsel %vm1477, %v1469, %v1489
  %v1494 = vsel %vm1478, %v1472, %v1490
  %1495 = vst.msk [vmem:[%s7] sm:$0xff] %vm1241, %v1491
  %1496 = vst.msk [vmem:[%s7 + $0x8] sm:$0xff] %vm1241, %v1492
  %1497 = vst.msk [vmem:[%s7 + $0x10] sm:$0xff] %vm1241, %v1493
  %1498 = vst.msk [vmem:[%s7 + $0x18] sm:$0xff] %vm1241, %v1494
  // Predicated region
  $region30: #{tpu_custom_call.1} parent=0 // pred_check
    _
  $region31: #{tpu_custom_call.1} parent=0 // pred_check_branch
    %1500 = sbr.rel (0) target = $region33
  $region32: #{tpu_custom_call.1} parent=0 // pred_region
    _
  $region33: #{tpu_custom_call.1} parent=0 // pred_fallthru
    _
  // Predicated region
  $region34: #{tpu_custom_call.1} parent=0 // pred_check
    _
  $region35: #{tpu_custom_call.1} parent=0 // pred_check_branch
    %1502 = sbr.rel (0) target = $region37
  $region36: #{tpu_custom_call.1} parent=0 // pred_region
    _
  $region37: #{tpu_custom_call.1} parent=0 // pred_fallthru
    _

</llo_original>
